<compile_context>
chip_gen: v6e
topology: v6e:2x2x1
jax: 0.10.0
libtpu: 0.0.40
codegen_flags: <defaults>
</compile_context>

<pallas_src>
import jax
import jax.numpy as jnp
import numpy as np
from jax.experimental import pallas as pl
from jax.experimental.pallas import tpu as pltpu

# ---- sizes (small, but consistent with the module) --------------------------
B = 2            # batch
P = 8            # num_proposals
NUM_CLASS = 18   # ScannetDatasetConfig().num_class
FEAT = 128       # feat_size
F2D = 2048       # 2D feature width
H2D = 512        # fc_2d hidden
PE = 32          # ape / rpe / bbox_2d embedding width
DOUT = FEAT + 2 * PE + NUM_CLASS     # = feat_size + 64 + num_class = 210
EPS = 1e-5

# padded kernel output layout: lane-aligned segments, 2 vregs per row
DOUT_PAD = 256
OFF_MAIN = 0      # obj_feats / f2d   (128 wide)
OFF_A = 128       # ape / bb2d        (32 wide)
OFF_RPE = 160     # rpe               (32 wide)
OFF_OH = 192      # one-hot, padded   (32 wide)
OH_PAD = 32

# packed small-input layout (lane-padded to 32):
#   [obb6 | d_xyz3 | ratio3 | bbox2d4 | sem1 | mask1 | pad14]
SMALL_W = 32
SMALL_K = 16      # rows of the block-diagonal small weight that are non-zero
SEM_LANE = 16
MASK_LANE = 17

# fc_2d K-split: 4 grid steps of 512 so the w2d1 DMA pipelines against compute
TK = 512
NK = F2D // TK

assert NUM_CLASS <= OH_PAD, "one-hot pad must cover num_class"
assert FEAT + 3 * PE + OH_PAD <= DOUT_PAD


def _layer_norm(x, gamma, beta):
    mu = jnp.mean(x, axis=-1, keepdims=True)
    var = jnp.mean((x - mu) ** 2, axis=-1, keepdims=True)
    return (x - mu) * jax.lax.rsqrt(var + EPS) * gamma + beta


def _caption_feat_kernel(
    small_ref,      # (R, 32)      f32  packed geometric/sem/mask input
    obj_ref,        # (R, FEAT)    f32
    feat2d_ref,     # (R, TK)      bf16  (k-th K chunk)
    w2d1_ref,       # (TK, H2D)    bf16  (k-th K chunk)
    w2d2_ref,       # (H2D, FEAT)  bf16
    vec2d_ref,      # (4, H2D)     f32  rows: b2d1, g2d, be2d, b2d2 (zero-padded)
    wsmall_ref,     # (32, 3*PE)   f32  block-diag [w_ape | w_rpe | w_bb], rows>=16 zero
    vecsmall_ref,   # (3, 3*PE)    f32  rows: bias, gamma, beta
    out_obj_ref,    # (R, DOUT_PAD) f32
    out_2d_ref,     # (R, DOUT_PAD) f32
    h_acc,          # (R, H2D)     f32 scratch accumulator
):
    f32 = jnp.float32
    bf16 = jnp.bfloat16
    k = pl.program_id(0)
    nk = pl.num_programs(0)
    r = obj_ref.shape[0]

    @pl.when(k == 0)
    def _():
        h_acc[...] = jnp.zeros_like(h_acc)

    # partial fc_2d first matmul: bf16 operands, f32 accumulation.  K-splitting
    # lets BlockSpec double-buffer the dominant w2d1 DMA against compute/stores.
    h_acc[...] += jnp.dot(feat2d_ref[...], w2d1_ref[...],
                          preferred_element_type=f32)

    @pl.when(k == nk - 1)
    def _():
        small = small_ref[...]                              # (R, 32) f32
        sem = small[:, SEM_LANE:SEM_LANE + 1].astype(jnp.int32)
        mask = small[:, MASK_LANE:MASK_LANE + 1]            # (R, 1)

        # fused ape / rpe / bbox_2d embedding against the block-diagonal packed
        # weight.  Kept in FULL f32: unrolled VPU FMA over K=16 (geometric
        # coordinates must not be rounded to bf16; cost is negligible here).
        z = jnp.zeros((r, 3 * PE), f32) + vecsmall_ref[0:1, :]
        for kk in range(SMALL_K):
            z = z + small[:, kk:kk + 1] * wsmall_ref[kk:kk + 1, :]
        gam = vecsmall_ref[1:2, :]
        bet = vecsmall_ref[2:3, :]
        ape = _layer_norm(z[:, 0:PE], gam[:, 0:PE], bet[:, 0:PE])
        rpe = _layer_norm(z[:, PE:2 * PE], gam[:, PE:2 * PE], bet[:, PE:2 * PE])
        bb2d = _layer_norm(z[:, 2 * PE:3 * PE], gam[:, 2 * PE:3 * PE],
                           bet[:, 2 * PE:3 * PE])

        # fc_2d epilogue: bias + ReLU + LayerNorm + Linear(512->128)
        h = jnp.maximum(h_acc[...] + vec2d_ref[0:1, :], 0.0)
        h = _layer_norm(h, vec2d_ref[1:2, :], vec2d_ref[2:3, :])
        f2d = jnp.dot(h.astype(bf16), w2d2_ref[...], preferred_element_type=f32)
        f2d = f2d + vec2d_ref[3:4, 0:FEAT]

        # sem_cls one-hot (scatter_ equivalent), zero-padded to 32 lanes
        one_hot = (jax.lax.broadcasted_iota(jnp.int32, (r, OH_PAD), 1)
                   == sem).astype(f32)

        # assemble the second 128-lane vreg in registers; store unmasked.
        zeros_tail = jnp.zeros((r, DOUT_PAD - OFF_OH - OH_PAD), f32)
        tail_obj = jnp.concatenate([ape, rpe, one_hot, zeros_tail], axis=-1) * mask
        tail_2d = jnp.concatenate([bb2d, rpe, one_hot, zeros_tail], axis=-1) * mask

        out_obj_ref[:, OFF_MAIN:OFF_MAIN + FEAT] = obj_ref[...] * mask
        out_obj_ref[:, FEAT:DOUT_PAD] = tail_obj
        out_2d_ref[:, OFF_MAIN:OFF_MAIN + FEAT] = f2d * mask
        out_2d_ref[:, FEAT:DOUT_PAD] = tail_2d


def pack_params(params):
    """One-time packing: 18 tiny param arrays -> 3 packed arrays + 2 bf16 weights."""
    f32 = jnp.float32
    w_small = jnp.zeros((SMALL_W, 3 * PE), f32)
    w_small = w_small.at[0:6, 0:PE].set(params["w_ape"])
    w_small = w_small.at[6:12, PE:2 * PE].set(params["w_rpe"])
    w_small = w_small.at[12:16, 2 * PE:3 * PE].set(params["wbb"])
    vec_small = jnp.concatenate([
        jnp.concatenate([params["b_ape"], params["b_rpe"], params["bbb"]], axis=-1),
        jnp.concatenate([params["g_ape"], params["g_rpe"], params["gbb"]], axis=-1),
        jnp.concatenate([params["be_ape"], params["be_rpe"], params["bebb"]], axis=-1),
    ], axis=0)                                              # (3, 96)
    b2d2_pad = jnp.zeros((1, H2D), f32).at[:, 0:FEAT].set(params["b2d2"])
    vec_2d = jnp.concatenate(
        [params["b2d1"], params["g2d"], params["be2d"], b2d2_pad], axis=0)  # (4, 512)
    return dict(
        w2d1=params["w2d1"].astype(jnp.bfloat16),
        w2d2=params["w2d2"].astype(jnp.bfloat16),
        vec_2d=vec_2d,
        w_small=w_small,          # stays f32 (small path is full precision)
        vec_small=vec_small,
    )


@jax.jit
def caption_features(obj_feats, pred_obbs, sem_cls, bbox_mask, feat_2d, bbox_2d,
                     bbox_idx, packed):
    b, p, feat = obj_feats.shape
    r = b * p
    f32 = jnp.float32

    # target obb gather (torch.gather over proposals) + rpe inputs, wrapper-side
    obbs = pred_obbs.reshape(r, 7)
    tgt = pred_obbs[jnp.arange(b), bbox_idx]            # (B, 7)
    tgt_rep = jnp.repeat(tgt[:, 0:6], p, axis=0)        # (R, 6)
    d_xyz = obbs[:, 0:3] - tgt_rep[:, 0:3]
    # no epsilon/clamp: matches the torch module (degenerate target boxes
    # produce Inf/NaN there as well)
    ratio = obbs[:, 3:6] / tgt_rep[:, 3:6]

    # one lane-padded packed small input: all tiny per-row operands in one DMA
    small = jnp.concatenate([
        obbs[:, 0:6], d_xyz, ratio, bbox_2d.reshape(r, 4),
        sem_cls.reshape(r, 1).astype(f32), bbox_mask.reshape(r, 1),
        jnp.zeros((r, SMALL_W - 18), f32)], axis=-1)     # (R, 32)

    inputs = (
        small,
        obj_feats.reshape(r, feat),
        feat_2d.reshape(r, F2D).astype(jnp.bfloat16),    # shipped as bf16
        packed["w2d1"],
        packed["w2d2"],
        packed["vec_2d"],
        packed["w_small"],
        packed["vec_small"],
    )

    const = lambda k: (0, 0)
    in_specs = [
        pl.BlockSpec((r, SMALL_W), const),
        pl.BlockSpec((r, FEAT), const),
        pl.BlockSpec((r, TK), lambda k: (0, k)),         # K-chunk of feat_2d
        pl.BlockSpec((TK, H2D), lambda k: (k, 0)),       # K-chunk of w2d1
        pl.BlockSpec((H2D, FEAT), const),
        pl.BlockSpec((4, H2D), const),
        pl.BlockSpec((SMALL_W, 3 * PE), const),
        pl.BlockSpec((3, 3 * PE), const),
    ]
    out_specs = (pl.BlockSpec((r, DOUT_PAD), const),
                 pl.BlockSpec((r, DOUT_PAD), const))
    out_shape = (jax.ShapeDtypeStruct((r, DOUT_PAD), f32),
                 jax.ShapeDtypeStruct((r, DOUT_PAD), f32))

    flops = 2 * r * F2D * H2D + 2 * r * H2D * FEAT + 2 * r * SMALL_K * 3 * PE
    bytes_accessed = (F2D * H2D * 2 + H2D * FEAT * 2 + r * F2D * 2
                      + r * FEAT * 4 + r * SMALL_W * 4
                      + 2 * r * DOUT_PAD * 4 + 8192)

    out_obj_pad, out_2d_pad = pl.pallas_call(
        _caption_feat_kernel,
        grid=(NK,),
        in_specs=in_specs,
        out_specs=out_specs,
        out_shape=out_shape,
        scratch_shapes=[pltpu.VMEM((r, H2D), f32)],
        compiler_params=pltpu.CompilerParams(
            dimension_semantics=("arbitrary",)),
        cost_estimate=pl.CostEstimate(
            flops=flops, transcendentals=4 * r, bytes_accessed=bytes_accessed),
    )(*inputs)

    # reassemble the module's original (non-padded) channel ordering
    out_obj = jnp.concatenate(
        [out_obj_pad[:, 0:FEAT],
         out_obj_pad[:, OFF_OH:OFF_OH + NUM_CLASS],
         out_obj_pad[:, OFF_A:OFF_A + PE],
         out_obj_pad[:, OFF_RPE:OFF_RPE + PE]], axis=-1)
    out_2d = jnp.concatenate(
        [out_2d_pad[:, 0:FEAT],
         out_2d_pad[:, OFF_A:OFF_A + PE],
         out_2d_pad[:, OFF_OH:OFF_OH + NUM_CLASS],
         out_2d_pad[:, OFF_RPE:OFF_RPE + PE]], axis=-1)
    return out_obj.reshape(b, p, DOUT), out_2d.reshape(b, p, DOUT)


def init_params(key):
    ks = jax.random.split(key, 8)
    f32 = jnp.float32

    def lin(k, cin, cout):
        return (jax.random.normal(k, (cin, cout), f32) * 0.05,
                jnp.zeros((1, cout), f32))

    w_ape, b_ape = lin(ks[0], 6, PE)
    w_rpe, b_rpe = lin(ks[1], 6, PE)
    w2d1, b2d1 = lin(ks[2], F2D, H2D)
    w2d2, b2d2 = lin(ks[3], H2D, FEAT)
    wbb, bbb = lin(ks[4], 4, PE)
    return dict(
        w_ape=w_ape, b_ape=b_ape, g_ape=jnp.ones((1, PE), f32), be_ape=jnp.zeros((1, PE), f32),
        w_rpe=w_rpe, b_rpe=b_rpe, g_rpe=jnp.ones((1, PE), f32), be_rpe=jnp.zeros((1, PE), f32),
        w2d1=w2d1, b2d1=b2d1, g2d=jnp.ones((1, H2D), f32), be2d=jnp.zeros((1, H2D), f32),
        w2d2=w2d2, b2d2=b2d2,
        wbb=wbb, bbb=bbb, gbb=jnp.ones((1, PE), f32), bebb=jnp.zeros((1, PE), f32),
    )


def reference(obj_feats, pred_obbs, sem_cls, bbox_mask, feat_2d, bbox_2d,
              bbox_idx, p):
    bf16 = jnp.bfloat16
    hi = jax.lax.Precision.HIGHEST

    def ln(x, g, b):
        mu = jnp.mean(x, axis=-1, keepdims=True)
        var = jnp.mean((x - mu) ** 2, axis=-1, keepdims=True)
        return (x - mu) * jax.lax.rsqrt(var + EPS) * g + b

    def mm_bf16(x, w):
        # fc_2d path: bf16 matmul operands, f32 accumulation — mirrors the kernel
        return jnp.dot(x.astype(bf16), w.astype(bf16),
                       preferred_element_type=jnp.float32)

    def mm_f32(x, w):
        # small geometric path stays full f32 — mirrors the kernel
        return jnp.dot(x, w, precision=hi, preferred_element_type=jnp.float32)

    ape = ln(mm_f32(pred_obbs[..., :6], p["w_ape"]) + p["b_ape"], p["g_ape"], p["be_ape"])
    tgt = pred_obbs[jnp.arange(pred_obbs.shape[0]), bbox_idx][:, None, :]    # (B,1,7)
    rpe_in = jnp.concatenate(
        [pred_obbs[..., :3] - tgt[..., :3], pred_obbs[..., 3:6] / tgt[..., 3:6]], -1)
    rpe = ln(mm_f32(rpe_in, p["w_rpe"]) + p["b_rpe"], p["g_rpe"], p["be_rpe"])
    one_hot = jax.nn.one_hot(sem_cls[..., 0], NUM_CLASS, dtype=jnp.float32)
    h = jnp.maximum(mm_bf16(feat_2d, p["w2d1"]) + p["b2d1"], 0.0)
    h = ln(h, p["g2d"], p["be2d"])
    f2d = mm_bf16(h, p["w2d2"]) + p["b2d2"]
    bb2d = ln(mm_f32(bbox_2d, p["wbb"]) + p["bbb"], p["gbb"], p["bebb"])
    out_obj = jnp.concatenate([obj_feats, one_hot, ape, rpe], -1) * bbox_mask
    out_2d = jnp.concatenate([f2d, bb2d, one_hot, rpe], -1) * bbox_mask
    return out_obj, out_2d


if __name__ == "__main__":
    key = jax.random.PRNGKey(0)
    k = jax.random.split(key, 10)

    obj_feats = jax.random.normal(k[0], (B, P, FEAT), jnp.float32)
    centers = jax.random.normal(k[1], (B, P, 3), jnp.float32)
    sizes = jax.random.uniform(k[2], (B, P, 3), jnp.float32, 0.5, 1.5)
    heading = jax.random.normal(k[3], (B, P, 1), jnp.float32)
    pred_obbs = jnp.concatenate([centers, sizes, heading], -1)      # (B,P,7)
    sem_cls = jax.random.randint(k[4], (B, P, 1), 0, NUM_CLASS, jnp.int32)
    bbox_mask = (jax.random.uniform(k[5], (B, P, 1)) > 0.25).astype(jnp.float32)
    feat_2d = jax.random.normal(k[6], (B, P, F2D), jnp.float32)
    bbox_2d = jax.random.uniform(k[7], (B, P, 4), jnp.float32)
    bbox_idx = jax.random.randint(k[8], (B,), 0, P, jnp.int32)
    params = init_params(k[9])
    packed = pack_params(params)

    out_obj, out_2d = caption_features(
        obj_feats, pred_obbs, sem_cls, bbox_mask, feat_2d, bbox_2d, bbox_idx, packed)
    jax.block_until_ready((out_obj, out_2d))

    ref_obj, ref_2d = reference(
        obj_feats, pred_obbs, sem_cls, bbox_mask, feat_2d, bbox_2d, bbox_idx, params)
    np.testing.assert_allclose(np.asarray(out_obj), np.asarray(ref_obj),
                               rtol=2e-3, atol=2e-3)
    np.testing.assert_allclose(np.asarray(out_2d), np.asarray(ref_2d),
                               rtol=2e-3, atol=2e-3)

    print("KERNEL_OK")
</pallas_src>

<mosaic_0001>
module attributes {stable_mosaic.version = 11 : i64} {
  func.func @_caption_feat_kernel(%arg0: i32, %arg1: memref<16x32xf32, #tpu.memory_space<vmem>>, %arg2: memref<16x128xf32, #tpu.memory_space<vmem>>, %arg3: memref<16x512xbf16, #tpu.memory_space<vmem>>, %arg4: memref<512x512xbf16, #tpu.memory_space<vmem>>, %arg5: memref<512x128xbf16, #tpu.memory_space<vmem>>, %arg6: memref<4x512xf32, #tpu.memory_space<vmem>>, %arg7: memref<32x96xf32, #tpu.memory_space<vmem>>, %arg8: memref<3x96xf32, #tpu.memory_space<vmem>>, %arg9: memref<16x256xf32, #tpu.memory_space<vmem>>, %arg10: memref<16x256xf32, #tpu.memory_space<vmem>>, %arg11: memref<16x512xf32, #tpu.memory_space<vmem>>) attributes {dimension_semantics = [#tpu.dimension_semantics<arbitrary>], iteration_bounds = array<i64: 4>, scalar_prefetch = 0 : i64, scratch_operands = 1 : i64, tpu.core_type = #tpu.core_type<tc>, window_params = [{pipeline_mode = #tpu.pipeline_mode<synchronous>, transform_indices = @transform_0, window_bounds = array<i64: 16, 32>}, {pipeline_mode = #tpu.pipeline_mode<synchronous>, transform_indices = @transform_1, window_bounds = array<i64: 16, 128>}, {transform_indices = @transform_2, window_bounds = array<i64: 16, 512>}, {transform_indices = @transform_3, window_bounds = array<i64: 512, 512>}, {pipeline_mode = #tpu.pipeline_mode<synchronous>, transform_indices = @transform_4, window_bounds = array<i64: 512, 128>}, {pipeline_mode = #tpu.pipeline_mode<synchronous>, transform_indices = @transform_5, window_bounds = array<i64: 4, 512>}, {pipeline_mode = #tpu.pipeline_mode<synchronous>, transform_indices = @transform_6, window_bounds = array<i64: 32, 96>}, {pipeline_mode = #tpu.pipeline_mode<synchronous>, transform_indices = @transform_7, window_bounds = array<i64: 3, 96>}, {pipeline_mode = #tpu.pipeline_mode<synchronous>, transform_indices = @transform_8, window_bounds = array<i64: 16, 256>}, {pipeline_mode = #tpu.pipeline_mode<synchronous>, transform_indices = @transform_9, window_bounds = array<i64: 16, 256>}]} {
    %c0_i32 = arith.constant 0 : i32
    %0 = arith.cmpi eq, %arg0, %c0_i32 : i32
    %1 = arith.extui %0 : i1 to i32
    %c0_i32_0 = arith.constant 0 : i32
    %2 = arith.cmpi ne, %1, %c0_i32_0 : i32
    scf.if %2 {
      %cst_9 = arith.constant 0.000000e+00 : f32
      %12 = vector.broadcast %cst_9 : f32 to vector<16x512xf32>
      %c0_10 = arith.constant 0 : index
      %c0_11 = arith.constant 0 : index
      %13 = vector.load %arg11[%c0_10, %c0_11] : memref<16x512xf32, #tpu.memory_space<vmem>>, vector<16x512xf32>
      tpu.vector_store %arg11[%c0_10, %c0_11], %12 {strides = array<i32>} : memref<16x512xf32, #tpu.memory_space<vmem>>, vector<16x512xf32>,
    } else {
    }
    %c0 = arith.constant 0 : index
    %c0_1 = arith.constant 0 : index
    %3 = vector.load %arg11[%c0, %c0_1] : memref<16x512xf32, #tpu.memory_space<vmem>>, vector<16x512xf32>
    %c0_2 = arith.constant 0 : index
    %c0_3 = arith.constant 0 : index
    %4 = vector.load %arg3[%c0_2, %c0_3] : memref<16x512xbf16, #tpu.memory_space<vmem>>, vector<16x512xbf16>
    %c0_4 = arith.constant 0 : index
    %c0_5 = arith.constant 0 : index
    %5 = vector.load %arg4[%c0_4, %c0_5] : memref<512x512xbf16, #tpu.memory_space<vmem>>, vector<512x512xbf16>
    %cst = arith.constant dense<0.000000e+00> : vector<16x512xf32>
    %6 = tpu.matmul %4, %5, %cst {dimension_numbers = #tpu.dot_dimension_numbers<[1], [0], [0], [1], [0, 0, 1, 1], [], []>} : vector<16x512xbf16>, vector<512x512xbf16>, vector<16x512xf32> -> vector<16x512xf32>
    %7 = arith.addf %3, %6 : vector<16x512xf32>
    %c0_6 = arith.constant 0 : index
    %c0_7 = arith.constant 0 : index
    %8 = vector.load %arg11[%c0_6, %c0_7] : memref<16x512xf32, #tpu.memory_space<vmem>>, vector<16x512xf32>
    tpu.vector_store %arg11[%c0_6, %c0_7], %7 {strides = array<i32>} : memref<16x512xf32, #tpu.memory_space<vmem>>, vector<16x512xf32>,
    %c3_i32 = arith.constant 3 : i32
    %9 = arith.cmpi eq, %arg0, %c3_i32 : i32
    %10 = arith.extui %9 : i1 to i32
    %c0_i32_8 = arith.constant 0 : i32
    %11 = arith.cmpi ne, %10, %c0_i32_8 : i32
    scf.if %11 {
      %c0_9 = arith.constant 0 : index
      %c0_10 = arith.constant 0 : index
      %12 = vector.load %arg1[%c0_9, %c0_10] : memref<16x32xf32, #tpu.memory_space<vmem>>, vector<16x32xf32>
      %13 = vector.extract_strided_slice %12 {offsets = [0, 16], sizes = [16, 1], strides = [1, 1]} : vector<16x32xf32> to vector<16x1xf32>
      %14 = arith.fptosi %13 : vector<16x1xf32> to vector<16x1xi32>
      %15 = vector.extract_strided_slice %12 {offsets = [0, 17], sizes = [16, 1], strides = [1, 1]} : vector<16x32xf32> to vector<16x1xf32>
      %cst_11 = arith.constant 0.000000e+00 : f32
      %16 = vector.broadcast %cst_11 : f32 to vector<16x96xf32>
      %c0_12 = arith.constant 0 : index
      %c0_13 = arith.constant 0 : index
      %17 = vector.load %arg8[%c0_12, %c0_13] : memref<3x96xf32, #tpu.memory_space<vmem>>, vector<1x96xf32>
      %18 = vector.broadcast %17 : vector<1x96xf32> to vector<16x96xf32>
      %19 = arith.addf %16, %18 : vector<16x96xf32>
      %20 = vector.extract_strided_slice %12 {offsets = [0, 0], sizes = [16, 1], strides = [1, 1]} : vector<16x32xf32> to vector<16x1xf32>
      %c0_14 = arith.constant 0 : index
      %c0_15 = arith.constant 0 : index
      %21 = vector.load %arg7[%c0_14, %c0_15] : memref<32x96xf32, #tpu.memory_space<vmem>>, vector<1x96xf32>
      %22 = vector.broadcast %20 : vector<16x1xf32> to vector<16x96xf32>
      %23 = vector.broadcast %21 : vector<1x96xf32> to vector<16x96xf32>
      %24 = arith.mulf %22, %23 : vector<16x96xf32>
      %25 = arith.addf %19, %24 : vector<16x96xf32>
      %26 = vector.extract_strided_slice %12 {offsets = [0, 1], sizes = [16, 1], strides = [1, 1]} : vector<16x32xf32> to vector<16x1xf32>
      %c1 = arith.constant 1 : index
      %c0_16 = arith.constant 0 : index
      %27 = vector.load %arg7[%c1, %c0_16] : memref<32x96xf32, #tpu.memory_space<vmem>>, vector<1x96xf32>
      %28 = vector.broadcast %26 : vector<16x1xf32> to vector<16x96xf32>
      %29 = vector.broadcast %27 : vector<1x96xf32> to vector<16x96xf32>
      %30 = arith.mulf %28, %29 : vector<16x96xf32>
      %31 = arith.addf %25, %30 : vector<16x96xf32>
      %32 = vector.extract_strided_slice %12 {offsets = [0, 2], sizes = [16, 1], strides = [1, 1]} : vector<16x32xf32> to vector<16x1xf32>
      %c2 = arith.constant 2 : index
      %c0_17 = arith.constant 0 : index
      %33 = vector.load %arg7[%c2, %c0_17] : memref<32x96xf32, #tpu.memory_space<vmem>>, vector<1x96xf32>
      %34 = vector.broadcast %32 : vector<16x1xf32> to vector<16x96xf32>
      %35 = vector.broadcast %33 : vector<1x96xf32> to vector<16x96xf32>
      %36 = arith.mulf %34, %35 : vector<16x96xf32>
      %37 = arith.addf %31, %36 : vector<16x96xf32>
      %38 = vector.extract_strided_slice %12 {offsets = [0, 3], sizes = [16, 1], strides = [1, 1]} : vector<16x32xf32> to vector<16x1xf32>
      %c3 = arith.constant 3 : index
      %c0_18 = arith.constant 0 : index
      %39 = vector.load %arg7[%c3, %c0_18] : memref<32x96xf32, #tpu.memory_space<vmem>>, vector<1x96xf32>
      %40 = vector.broadcast %38 : vector<16x1xf32> to vector<16x96xf32>
      %41 = vector.broadcast %39 : vector<1x96xf32> to vector<16x96xf32>
      %42 = arith.mulf %40, %41 : vector<16x96xf32>
      %43 = arith.addf %37, %42 : vector<16x96xf32>
      %44 = vector.extract_strided_slice %12 {offsets = [0, 4], sizes = [16, 1], strides = [1, 1]} : vector<16x32xf32> to vector<16x1xf32>
      %c4 = arith.constant 4 : index
      %c0_19 = arith.constant 0 : index
      %45 = vector.load %arg7[%c4, %c0_19] : memref<32x96xf32, #tpu.memory_space<vmem>>, vector<1x96xf32>
      %46 = vector.broadcast %44 : vector<16x1xf32> to vector<16x96xf32>
      %47 = vector.broadcast %45 : vector<1x96xf32> to vector<16x96xf32>
      %48 = arith.mulf %46, %47 : vector<16x96xf32>
      %49 = arith.addf %43, %48 : vector<16x96xf32>
      %50 = vector.extract_strided_slice %12 {offsets = [0, 5], sizes = [16, 1], strides = [1, 1]} : vector<16x32xf32> to vector<16x1xf32>
      %c5 = arith.constant 5 : index
      %c0_20 = arith.constant 0 : index
      %51 = vector.load %arg7[%c5, %c0_20] : memref<32x96xf32, #tpu.memory_space<vmem>>, vector<1x96xf32>
      %52 = vector.broadcast %50 : vector<16x1xf32> to vector<16x96xf32>
      %53 = vector.broadcast %51 : vector<1x96xf32> to vector<16x96xf32>
      %54 = arith.mulf %52, %53 : vector<16x96xf32>
      %55 = arith.addf %49, %54 : vector<16x96xf32>
      %56 = vector.extract_strided_slice %12 {offsets = [0, 6], sizes = [16, 1], strides = [1, 1]} : vector<16x32xf32> to vector<16x1xf32>
      %c6 = arith.constant 6 : index
      %c0_21 = arith.constant 0 : index
      %57 = vector.load %arg7[%c6, %c0_21] : memref<32x96xf32, #tpu.memory_space<vmem>>, vector<1x96xf32>
      %58 = vector.broadcast %56 : vector<16x1xf32> to vector<16x96xf32>
      %59 = vector.broadcast %57 : vector<1x96xf32> to vector<16x96xf32>
      %60 = arith.mulf %58, %59 : vector<16x96xf32>
      %61 = arith.addf %55, %60 : vector<16x96xf32>
      %62 = vector.extract_strided_slice %12 {offsets = [0, 7], sizes = [16, 1], strides = [1, 1]} : vector<16x32xf32> to vector<16x1xf32>
      %c7 = arith.constant 7 : index
      %c0_22 = arith.constant 0 : index
      %63 = vector.load %arg7[%c7, %c0_22] : memref<32x96xf32, #tpu.memory_space<vmem>>, vector<1x96xf32>
      %64 = vector.broadcast %62 : vector<16x1xf32> to vector<16x96xf32>
      %65 = vector.broadcast %63 : vector<1x96xf32> to vector<16x96xf32>
      %66 = arith.mulf %64, %65 : vector<16x96xf32>
      %67 = arith.addf %61, %66 : vector<16x96xf32>
      %68 = vector.extract_strided_slice %12 {offsets = [0, 8], sizes = [16, 1], strides = [1, 1]} : vector<16x32xf32> to vector<16x1xf32>
      %c8 = arith.constant 8 : index
      %c0_23 = arith.constant 0 : index
      %69 = vector.load %arg7[%c8, %c0_23] : memref<32x96xf32, #tpu.memory_space<vmem>>, vector<1x96xf32>
      %70 = vector.broadcast %68 : vector<16x1xf32> to vector<16x96xf32>
      %71 = vector.broadcast %69 : vector<1x96xf32> to vector<16x96xf32>
      %72 = arith.mulf %70, %71 : vector<16x96xf32>
      %73 = arith.addf %67, %72 : vector<16x96xf32>
      %74 = vector.extract_strided_slice %12 {offsets = [0, 9], sizes = [16, 1], strides = [1, 1]} : vector<16x32xf32> to vector<16x1xf32>
      %c9 = arith.constant 9 : index
      %c0_24 = arith.constant 0 : index
      %75 = vector.load %arg7[%c9, %c0_24] : memref<32x96xf32, #tpu.memory_space<vmem>>, vector<1x96xf32>
      %76 = vector.broadcast %74 : vector<16x1xf32> to vector<16x96xf32>
      %77 = vector.broadcast %75 : vector<1x96xf32> to vector<16x96xf32>
      %78 = arith.mulf %76, %77 : vector<16x96xf32>
      %79 = arith.addf %73, %78 : vector<16x96xf32>
      %80 = vector.extract_strided_slice %12 {offsets = [0, 10], sizes = [16, 1], strides = [1, 1]} : vector<16x32xf32> to vector<16x1xf32>
      %c10 = arith.constant 10 : index
      %c0_25 = arith.constant 0 : index
      %81 = vector.load %arg7[%c10, %c0_25] : memref<32x96xf32, #tpu.memory_space<vmem>>, vector<1x96xf32>
      %82 = vector.broadcast %80 : vector<16x1xf32> to vector<16x96xf32>
      %83 = vector.broadcast %81 : vector<1x96xf32> to vector<16x96xf32>
      %84 = arith.mulf %82, %83 : vector<16x96xf32>
      %85 = arith.addf %79, %84 : vector<16x96xf32>
      %86 = vector.extract_strided_slice %12 {offsets = [0, 11], sizes = [16, 1], strides = [1, 1]} : vector<16x32xf32> to vector<16x1xf32>
      %c11 = arith.constant 11 : index
      %c0_26 = arith.constant 0 : index
      %87 = vector.load %arg7[%c11, %c0_26] : memref<32x96xf32, #tpu.memory_space<vmem>>, vector<1x96xf32>
      %88 = vector.broadcast %86 : vector<16x1xf32> to vector<16x96xf32>
      %89 = vector.broadcast %87 : vector<1x96xf32> to vector<16x96xf32>
      %90 = arith.mulf %88, %89 : vector<16x96xf32>
      %91 = arith.addf %85, %90 : vector<16x96xf32>
      %92 = vector.extract_strided_slice %12 {offsets = [0, 12], sizes = [16, 1], strides = [1, 1]} : vector<16x32xf32> to vector<16x1xf32>
      %c12 = arith.constant 12 : index
      %c0_27 = arith.constant 0 : index
      %93 = vector.load %arg7[%c12, %c0_27] : memref<32x96xf32, #tpu.memory_space<vmem>>, vector<1x96xf32>
      %94 = vector.broadcast %92 : vector<16x1xf32> to vector<16x96xf32>
      %95 = vector.broadcast %93 : vector<1x96xf32> to vector<16x96xf32>
      %96 = arith.mulf %94, %95 : vector<16x96xf32>
      %97 = arith.addf %91, %96 : vector<16x96xf32>
      %98 = vector.extract_strided_slice %12 {offsets = [0, 13], sizes = [16, 1], strides = [1, 1]} : vector<16x32xf32> to vector<16x1xf32>
      %c13 = arith.constant 13 : index
      %c0_28 = arith.constant 0 : index
      %99 = vector.load %arg7[%c13, %c0_28] : memref<32x96xf32, #tpu.memory_space<vmem>>, vector<1x96xf32>
      %100 = vector.broadcast %98 : vector<16x1xf32> to vector<16x96xf32>
      %101 = vector.broadcast %99 : vector<1x96xf32> to vector<16x96xf32>
      %102 = arith.mulf %100, %101 : vector<16x96xf32>
      %103 = arith.addf %97, %102 : vector<16x96xf32>
      %104 = vector.extract_strided_slice %12 {offsets = [0, 14], sizes = [16, 1], strides = [1, 1]} : vector<16x32xf32> to vector<16x1xf32>
      %c14 = arith.constant 14 : index
      %c0_29 = arith.constant 0 : index
      %105 = vector.load %arg7[%c14, %c0_29] : memref<32x96xf32, #tpu.memory_space<vmem>>, vector<1x96xf32>
      %106 = vector.broadcast %104 : vector<16x1xf32> to vector<16x96xf32>
      %107 = vector.broadcast %105 : vector<1x96xf32> to vector<16x96xf32>
      %108 = arith.mulf %106, %107 : vector<16x96xf32>
      %109 = arith.addf %103, %108 : vector<16x96xf32>
      %110 = vector.extract_strided_slice %12 {offsets = [0, 15], sizes = [16, 1], strides = [1, 1]} : vector<16x32xf32> to vector<16x1xf32>
      %c15 = arith.constant 15 : index
      %c0_30 = arith.constant 0 : index
      %111 = vector.load %arg7[%c15, %c0_30] : memref<32x96xf32, #tpu.memory_space<vmem>>, vector<1x96xf32>
      %112 = vector.broadcast %110 : vector<16x1xf32> to vector<16x96xf32>
      %113 = vector.broadcast %111 : vector<1x96xf32> to vector<16x96xf32>
      %114 = arith.mulf %112, %113 : vector<16x96xf32>
      %115 = arith.addf %109, %114 : vector<16x96xf32>
      %c1_31 = arith.constant 1 : index
      %c0_32 = arith.constant 0 : index
      %116 = vector.load %arg8[%c1_31, %c0_32] : memref<3x96xf32, #tpu.memory_space<vmem>>, vector<1x96xf32>
      %c2_33 = arith.constant 2 : index
      %c0_34 = arith.constant 0 : index
      %117 = vector.load %arg8[%c2_33, %c0_34] : memref<3x96xf32, #tpu.memory_space<vmem>>, vector<1x96xf32>
      %118 = vector.extract_strided_slice %115 {offsets = [0, 0], sizes = [16, 32], strides = [1, 1]} : vector<16x96xf32> to vector<16x32xf32>
      %119 = vector.extract_strided_slice %116 {offsets = [0, 0], sizes = [1, 32], strides = [1, 1]} : vector<1x96xf32> to vector<1x32xf32>
      %120 = vector.extract_strided_slice %117 {offsets = [0, 0], sizes = [1, 32], strides = [1, 1]} : vector<1x96xf32> to vector<1x32xf32>
      %cst_35 = arith.constant dense<0.000000e+00> : vector<16xf32>
      %121 = vector.multi_reduction <add>, %118, %cst_35 [1] : vector<16x32xf32> to vector<16xf32>
      %122 = vector.shape_cast %121 : vector<16xf32> to vector<16x1xf32>
      %cst_36 = arith.constant 3.200000e+01 : f32
      %123 = vector.broadcast %cst_36 : f32 to vector<16x1xf32>
      %124 = arith.divf %122, %123 : vector<16x1xf32>
      %125 = vector.broadcast %124 : vector<16x1xf32> to vector<16x32xf32>
      %126 = arith.subf %118, %125 : vector<16x32xf32>
      %127 = arith.mulf %126, %126 : vector<16x32xf32>
      %cst_37 = arith.constant dense<0.000000e+00> : vector<16xf32>
      %128 = vector.multi_reduction <add>, %127, %cst_37 [1] : vector<16x32xf32> to vector<16xf32>
      %129 = vector.shape_cast %128 : vector<16xf32> to vector<16x1xf32>
      %cst_38 = arith.constant 3.200000e+01 : f32
      %130 = vector.broadcast %cst_38 : f32 to vector<16x1xf32>
      %131 = arith.divf %129, %130 : vector<16x1xf32>
      %132 = vector.broadcast %124 : vector<16x1xf32> to vector<16x32xf32>
      %133 = arith.subf %118, %132 : vector<16x32xf32>
      %cst_39 = arith.constant 9.99999974E-6 : f32
      %134 = vector.broadcast %cst_39 : f32 to vector<16x1xf32>
      %135 = arith.addf %131, %134 : vector<16x1xf32>
      %136 = math.rsqrt %135 : vector<16x1xf32>
      %137 = vector.broadcast %136 : vector<16x1xf32> to vector<16x32xf32>
      %138 = arith.mulf %133, %137 : vector<16x32xf32>
      %139 = vector.broadcast %119 : vector<1x32xf32> to vector<16x32xf32>
      %140 = arith.mulf %138, %139 : vector<16x32xf32>
      %141 = vector.broadcast %120 : vector<1x32xf32> to vector<16x32xf32>
      %142 = arith.addf %140, %141 : vector<16x32xf32>
      %143 = vector.extract_strided_slice %115 {offsets = [0, 32], sizes = [16, 32], strides = [1, 1]} : vector<16x96xf32> to vector<16x32xf32>
      %144 = vector.extract_strided_slice %116 {offsets = [0, 32], sizes = [1, 32], strides = [1, 1]} : vector<1x96xf32> to vector<1x32xf32>
      %145 = vector.extract_strided_slice %117 {offsets = [0, 32], sizes = [1, 32], strides = [1, 1]} : vector<1x96xf32> to vector<1x32xf32>
      %cst_40 = arith.constant dense<0.000000e+00> : vector<16xf32>
      %146 = vector.multi_reduction <add>, %143, %cst_40 [1] : vector<16x32xf32> to vector<16xf32>
      %147 = vector.shape_cast %146 : vector<16xf32> to vector<16x1xf32>
      %cst_41 = arith.constant 3.200000e+01 : f32
      %148 = vector.broadcast %cst_41 : f32 to vector<16x1xf32>
      %149 = arith.divf %147, %148 : vector<16x1xf32>
      %150 = vector.broadcast %149 : vector<16x1xf32> to vector<16x32xf32>
      %151 = arith.subf %143, %150 : vector<16x32xf32>
      %152 = arith.mulf %151, %151 : vector<16x32xf32>
      %cst_42 = arith.constant dense<0.000000e+00> : vector<16xf32>
      %153 = vector.multi_reduction <add>, %152, %cst_42 [1] : vector<16x32xf32> to vector<16xf32>
      %154 = vector.shape_cast %153 : vector<16xf32> to vector<16x1xf32>
      %cst_43 = arith.constant 3.200000e+01 : f32
      %155 = vector.broadcast %cst_43 : f32 to vector<16x1xf32>
      %156 = arith.divf %154, %155 : vector<16x1xf32>
      %157 = vector.broadcast %149 : vector<16x1xf32> to vector<16x32xf32>
      %158 = arith.subf %143, %157 : vector<16x32xf32>
      %cst_44 = arith.constant 9.99999974E-6 : f32
      %159 = vector.broadcast %cst_44 : f32 to vector<16x1xf32>
      %160 = arith.addf %156, %159 : vector<16x1xf32>
      %161 = math.rsqrt %160 : vector<16x1xf32>
      %162 = vector.broadcast %161 : vector<16x1xf32> to vector<16x32xf32>
      %163 = arith.mulf %158, %162 : vector<16x32xf32>
      %164 = vector.broadcast %144 : vector<1x32xf32> to vector<16x32xf32>
      %165 = arith.mulf %163, %164 : vector<16x32xf32>
      %166 = vector.broadcast %145 : vector<1x32xf32> to vector<16x32xf32>
      %167 = arith.addf %165, %166 : vector<16x32xf32>
      %168 = vector.extract_strided_slice %115 {offsets = [0, 64], sizes = [16, 32], strides = [1, 1]} : vector<16x96xf32> to vector<16x32xf32>
      %169 = vector.extract_strided_slice %116 {offsets = [0, 64], sizes = [1, 32], strides = [1, 1]} : vector<1x96xf32> to vector<1x32xf32>
      %170 = vector.extract_strided_slice %117 {offsets = [0, 64], sizes = [1, 32], strides = [1, 1]} : vector<1x96xf32> to vector<1x32xf32>
      %cst_45 = arith.constant dense<0.000000e+00> : vector<16xf32>
      %171 = vector.multi_reduction <add>, %168, %cst_45 [1] : vector<16x32xf32> to vector<16xf32>
      %172 = vector.shape_cast %171 : vector<16xf32> to vector<16x1xf32>
      %cst_46 = arith.constant 3.200000e+01 : f32
      %173 = vector.broadcast %cst_46 : f32 to vector<16x1xf32>
      %174 = arith.divf %172, %173 : vector<16x1xf32>
      %175 = vector.broadcast %174 : vector<16x1xf32> to vector<16x32xf32>
      %176 = arith.subf %168, %175 : vector<16x32xf32>
      %177 = arith.mulf %176, %176 : vector<16x32xf32>
      %cst_47 = arith.constant dense<0.000000e+00> : vector<16xf32>
      %178 = vector.multi_reduction <add>, %177, %cst_47 [1] : vector<16x32xf32> to vector<16xf32>
      %179 = vector.shape_cast %178 : vector<16xf32> to vector<16x1xf32>
      %cst_48 = arith.constant 3.200000e+01 : f32
      %180 = vector.broadcast %cst_48 : f32 to vector<16x1xf32>
      %181 = arith.divf %179, %180 : vector<16x1xf32>
      %182 = vector.broadcast %174 : vector<16x1xf32> to vector<16x32xf32>
      %183 = arith.subf %168, %182 : vector<16x32xf32>
      %cst_49 = arith.constant 9.99999974E-6 : f32
      %184 = vector.broadcast %cst_49 : f32 to vector<16x1xf32>
      %185 = arith.addf %181, %184 : vector<16x1xf32>
      %186 = math.rsqrt %185 : vector<16x1xf32>
      %187 = vector.broadcast %186 : vector<16x1xf32> to vector<16x32xf32>
      %188 = arith.mulf %183, %187 : vector<16x32xf32>
      %189 = vector.broadcast %169 : vector<1x32xf32> to vector<16x32xf32>
      %190 = arith.mulf %188, %189 : vector<16x32xf32>
      %191 = vector.broadcast %170 : vector<1x32xf32> to vector<16x32xf32>
      %192 = arith.addf %190, %191 : vector<16x32xf32>
      %c0_50 = arith.constant 0 : index
      %c0_51 = arith.constant 0 : index
      %193 = vector.load %arg11[%c0_50, %c0_51] : memref<16x512xf32, #tpu.memory_space<vmem>>, vector<16x512xf32>
      %c0_52 = arith.constant 0 : index
      %c0_53 = arith.constant 0 : index
      %194 = vector.load %arg6[%c0_52, %c0_53] : memref<4x512xf32, #tpu.memory_space<vmem>>, vector<1x512xf32>
      %195 = vector.broadcast %194 : vector<1x512xf32> to vector<16x512xf32>
      %196 = arith.addf %193, %195 : vector<16x512xf32>
      %cst_54 = arith.constant 0.000000e+00 : f32
      %197 = vector.broadcast %cst_54 : f32 to vector<16x512xf32>
      %198 = arith.maximumf %196, %197 : vector<16x512xf32>
      %c1_55 = arith.constant 1 : index
      %c0_56 = arith.constant 0 : index
      %199 = vector.load %arg6[%c1_55, %c0_56] : memref<4x512xf32, #tpu.memory_space<vmem>>, vector<1x512xf32>
      %c2_57 = arith.constant 2 : index
      %c0_58 = arith.constant 0 : index
      %200 = vector.load %arg6[%c2_57, %c0_58] : memref<4x512xf32, #tpu.memory_space<vmem>>, vector<1x512xf32>
      %cst_59 = arith.constant dense<0.000000e+00> : vector<16xf32>
      %201 = vector.multi_reduction <add>, %198, %cst_59 [1] : vector<16x512xf32> to vector<16xf32>
      %202 = vector.shape_cast %201 : vector<16xf32> to vector<16x1xf32>
      %cst_60 = arith.constant 5.120000e+02 : f32
      %203 = vector.broadcast %cst_60 : f32 to vector<16x1xf32>
      %204 = arith.divf %202, %203 : vector<16x1xf32>
      %205 = vector.broadcast %204 : vector<16x1xf32> to vector<16x512xf32>
      %206 = arith.subf %198, %205 : vector<16x512xf32>
      %207 = arith.mulf %206, %206 : vector<16x512xf32>
      %cst_61 = arith.constant dense<0.000000e+00> : vector<16xf32>
      %208 = vector.multi_reduction <add>, %207, %cst_61 [1] : vector<16x512xf32> to vector<16xf32>
      %209 = vector.shape_cast %208 : vector<16xf32> to vector<16x1xf32>
      %cst_62 = arith.constant 5.120000e+02 : f32
      %210 = vector.broadcast %cst_62 : f32 to vector<16x1xf32>
      %211 = arith.divf %209, %210 : vector<16x1xf32>
      %212 = vector.broadcast %204 : vector<16x1xf32> to vector<16x512xf32>
      %213 = arith.subf %198, %212 : vector<16x512xf32>
      %cst_63 = arith.constant 9.99999974E-6 : f32
      %214 = vector.broadcast %cst_63 : f32 to vector<16x1xf32>
      %215 = arith.addf %211, %214 : vector<16x1xf32>
      %216 = math.rsqrt %215 : vector<16x1xf32>
      %217 = vector.broadcast %216 : vector<16x1xf32> to vector<16x512xf32>
      %218 = arith.mulf %213, %217 : vector<16x512xf32>
      %219 = vector.broadcast %199 : vector<1x512xf32> to vector<16x512xf32>
      %220 = arith.mulf %218, %219 : vector<16x512xf32>
      %221 = vector.broadcast %200 : vector<1x512xf32> to vector<16x512xf32>
      %222 = arith.addf %220, %221 : vector<16x512xf32>
      %223 = arith.truncf %222 : vector<16x512xf32> to vector<16x512xbf16>
      %c0_64 = arith.constant 0 : index
      %c0_65 = arith.constant 0 : index
      %224 = vector.load %arg5[%c0_64, %c0_65] : memref<512x128xbf16, #tpu.memory_space<vmem>>, vector<512x128xbf16>
      %cst_66 = arith.constant dense<0.000000e+00> : vector<16x128xf32>
      %225 = tpu.matmul %223, %224, %cst_66 {dimension_numbers = #tpu.dot_dimension_numbers<[1], [0], [0], [1], [0, 0, 1, 1], [], []>} : vector<16x512xbf16>, vector<512x128xbf16>, vector<16x128xf32> -> vector<16x128xf32>
      %c3_67 = arith.constant 3 : index
      %c0_68 = arith.constant 0 : index
      %226 = vector.load %arg6[%c3_67, %c0_68] : memref<4x512xf32, #tpu.memory_space<vmem>>, vector<1x128xf32>
      %227 = vector.broadcast %226 : vector<1x128xf32> to vector<16x128xf32>
      %228 = arith.addf %225, %227 : vector<16x128xf32>
      %229 = tpu.iota {dimensions = array<i32: 1>} : vector<16x32xi32>
      %230 = vector.broadcast %14 : vector<16x1xi32> to vector<16x32xi32>
      %231 = arith.cmpi eq, %229, %230 : vector<16x32xi32>
      %232 = arith.extui %231 : vector<16x32xi1> to vector<16x32xi32>
      %233 = arith.sitofp %232 : vector<16x32xi32> to vector<16x32xf32>
      %cst_69 = arith.constant 0.000000e+00 : f32
      %234 = vector.broadcast %cst_69 : f32 to vector<16x32xf32>
      %235 = tpu.concatenate %142, %167, %233, %234 in 1 : vector<16x32xf32>, vector<16x32xf32>, vector<16x32xf32>, vector<16x32xf32> -> vector<16x128xf32>
      %236 = vector.broadcast %15 : vector<16x1xf32> to vector<16x128xf32>
      %237 = arith.mulf %235, %236 : vector<16x128xf32>
      %238 = tpu.concatenate %192, %167, %233, %234 in 1 : vector<16x32xf32>, vector<16x32xf32>, vector<16x32xf32>, vector<16x32xf32> -> vector<16x128xf32>
      %239 = vector.broadcast %15 : vector<16x1xf32> to vector<16x128xf32>
      %240 = arith.mulf %238, %239 : vector<16x128xf32>
      %c0_70 = arith.constant 0 : index
      %c0_71 = arith.constant 0 : index
      %241 = vector.load %arg2[%c0_70, %c0_71] : memref<16x128xf32, #tpu.memory_space<vmem>>, vector<16x128xf32>
      %242 = vector.broadcast %15 : vector<16x1xf32> to vector<16x128xf32>
      %243 = arith.mulf %241, %242 : vector<16x128xf32>
      %c0_72 = arith.constant 0 : index
      %c0_73 = arith.constant 0 : index
      %244 = vector.load %arg9[%c0_72, %c0_73] : memref<16x256xf32, #tpu.memory_space<vmem>>, vector<16x128xf32>
      tpu.vector_store %arg9[%c0_72, %c0_73], %243 {strides = array<i32>} : memref<16x256xf32, #tpu.memory_space<vmem>>, vector<16x128xf32>,
      %c0_74 = arith.constant 0 : index
      %c128 = arith.constant 128 : index
      %245 = vector.load %arg9[%c0_74, %c128] : memref<16x256xf32, #tpu.memory_space<vmem>>, vector<16x128xf32>
      tpu.vector_store %arg9[%c0_74, %c128], %237 {strides = array<i32>} : memref<16x256xf32, #tpu.memory_space<vmem>>, vector<16x128xf32>,
      %246 = vector.broadcast %15 : vector<16x1xf32> to vector<16x128xf32>
      %247 = arith.mulf %228, %246 : vector<16x128xf32>
      %c0_75 = arith.constant 0 : index
      %c0_76 = arith.constant 0 : index
      %248 = vector.load %arg10[%c0_75, %c0_76] : memref<16x256xf32, #tpu.memory_space<vmem>>, vector<16x128xf32>
      tpu.vector_store %arg10[%c0_75, %c0_76], %247 {strides = array<i32>} : memref<16x256xf32, #tpu.memory_space<vmem>>, vector<16x128xf32>,
      %c0_77 = arith.constant 0 : index
      %c128_78 = arith.constant 128 : index
      %249 = vector.load %arg10[%c0_77, %c128_78] : memref<16x256xf32, #tpu.memory_space<vmem>>, vector<16x128xf32>
      tpu.vector_store %arg10[%c0_77, %c128_78], %240 {strides = array<i32>} : memref<16x256xf32, #tpu.memory_space<vmem>>, vector<16x128xf32>,
    } else {
    }
    return
  }
  func.func @transform_0(%arg0: i32) -> (i32, i32) {
    %c0_i32 = arith.constant 0 : i32
    %c0_i32_0 = arith.constant 0 : i32
    %c0_i32_1 = arith.constant 0 : i32
    return %c0_i32, %c0_i32_0 : i32, i32
  }
  func.func @transform_1(%arg0: i32) -> (i32, i32) {
    %c0_i32 = arith.constant 0 : i32
    %c0_i32_0 = arith.constant 0 : i32
    %c0_i32_1 = arith.constant 0 : i32
    return %c0_i32, %c0_i32_0 : i32, i32
  }
  func.func @transform_2(%arg0: i32) -> (i32, i32) {
    %c0_i32 = arith.constant 0 : i32
    %c0_i32_0 = arith.constant 0 : i32
    return %c0_i32, %arg0 : i32, i32
  }
  func.func @transform_3(%arg0: i32) -> (i32, i32) {
    %c0_i32 = arith.constant 0 : i32
    %c0_i32_0 = arith.constant 0 : i32
    return %arg0, %c0_i32 : i32, i32
  }
  func.func @transform_4(%arg0: i32) -> (i32, i32) {
    %c0_i32 = arith.constant 0 : i32
    %c0_i32_0 = arith.constant 0 : i32
    %c0_i32_1 = arith.constant 0 : i32
    return %c0_i32, %c0_i32_0 : i32, i32
  }
  func.func @transform_5(%arg0: i32) -> (i32, i32) {
    %c0_i32 = arith.constant 0 : i32
    %c0_i32_0 = arith.constant 0 : i32
    %c0_i32_1 = arith.constant 0 : i32
    return %c0_i32, %c0_i32_0 : i32, i32
  }
  func.func @transform_6(%arg0: i32) -> (i32, i32) {
    %c0_i32 = arith.constant 0 : i32
    %c0_i32_0 = arith.constant 0 : i32
    %c0_i32_1 = arith.constant 0 : i32
    return %c0_i32, %c0_i32_0 : i32, i32
  }
  func.func @transform_7(%arg0: i32) -> (i32, i32) {
    %c0_i32 = arith.constant 0 : i32
    %c0_i32_0 = arith.constant 0 : i32
    %c0_i32_1 = arith.constant 0 : i32
    return %c0_i32, %c0_i32_0 : i32, i32
  }
  func.func @transform_8(%arg0: i32) -> (i32, i32) {
    %c0_i32 = arith.constant 0 : i32
    %c0_i32_0 = arith.constant 0 : i32
    %c0_i32_1 = arith.constant 0 : i32
    return %c0_i32, %c0_i32_0 : i32, i32
  }
  func.func @transform_9(%arg0: i32) -> (i32, i32) {
    %c0_i32 = arith.constant 0 : i32
    %c0_i32_0 = arith.constant 0 : i32
    %c0_i32_1 = arith.constant 0 : i32
    return %c0_i32, %c0_i32_0 : i32, i32
  }
}

</mosaic_0001>

<llo_original>
// kernel: caption_features.1
$region0: #{caption_features.1}
  #allocation0 [shape = 'u32[]', space=smem, size = 0x4, offset = 0x4, fixed_abs, tag = 'smem constant byte address 0x4 - core index']
  #allocation1 [shape = 'u32[144,128]{1,0:T(1,128)}', space=vmem, size = 0x12000, scoped, tag = 'internal scratch']
  #allocation2 [shape = 'f32[16,512]{1,0:T(8,128)}', space=vmem, size = 0x8000, scoped, tag = 'scratch operand']
  %s0 = inlined_call_operand.vmem [shape: f32[16,32], index: 0, kind: input, shape index: {}]
  %s1 = inlined_call_operand.hbm [shape: f32[16,128], index: 1, kind: input, shape index: {}]
  %s2 = inlined_call_operand.vmem [shape: bf16[16,2048], index: 2, kind: input, shape index: {}]
  %s3 = inlined_call_operand.hbm [shape: bf16[2048,512], index: 3, kind: input, shape index: {}]
  %s4 = inlined_call_operand.hbm [shape: bf16[512,128], index: 4, kind: input, shape index: {}]
  %s5 = inlined_call_operand.hbm [shape: f32[4,512], index: 5, kind: input, shape index: {}]
  %s6 = inlined_call_operand.hbm [shape: f32[32,96], index: 6, kind: input, shape index: {}]
  %s7 = inlined_call_operand.hbm [shape: f32[3,96], index: 7, kind: input, shape index: {}]
  %s8 = inlined_call_operand.vmem [shape: f32[16,256], index: 8, kind: output, shape index: {0}]
  %s9 = inlined_call_operand.vmem [shape: f32[16,256], index: 9, kind: output, shape index: {1}]
  %10 = xla_tuple %s8, %s9
  %s11 = sld [smem:[#allocation0]]
  $region128: #{caption_features.1} parent=0
    _
  %s13 = ssub.s32 1, %s11
  %s14 = scalar_select 0, %s13, %s11
  $region1: #{caption_features.1} parent=0
    #allocation3 [shape = 'u8[8192]{0}', space=vmem, size = 0x2000, scoped, tag = 'input window, operand 1, single buffered']
    #allocation4 [shape = 's32[2]{0}', space=sflag, size = 0x8, scoped, tag = 'scoped memory for caption_features.1']
    #allocation5 [shape = 'u8[32768]{0}', space=vmem, size = 0x8000, scoped, tag = 'input window, operand 2']
    #allocation6 [shape = 'u8[1048576]{0}', space=vmem, size = 0x100000, scoped, tag = 'input window, operand 3']
    #allocation7 [shape = 's32[2]{0}', space=sflag, size = 0x8, scoped, tag = 'scoped memory for caption_features.1']
    #allocation8 [shape = 'u8[131072]{0}', space=vmem, size = 0x20000, scoped, tag = 'input window, operand 4, single buffered']
    #allocation9 [shape = 'u8[8192]{0}', space=vmem, size = 0x2000, scoped, tag = 'input window, operand 5, single buffered']
    #allocation10 [shape = 's32[1]{0}', space=sflag, size = 0x4, scoped, tag = 'scoped memory for caption_features.1']
    #allocation11 [shape = 'u8[16384]{0}', space=vmem, size = 0x4000, scoped, tag = 'input window, operand 6, single buffered']
    #allocation12 [shape = 'u8[2048]{0}', space=vmem, size = 0x800, scoped, tag = 'input window, operand 7, single buffered']
    #allocation13 [shape = 's32[1]{0}', space=sflag, size = 0x4, scoped, tag = 'scoped memory for caption_features.1']
    %15 = vsyncpa [#allocation4], 0
    %16 = vsyncpa [#allocation7], 0
    %s17 = scalar_lea.sflag [#allocation7], 1
    %18 = vsyncpa %s17, 0
    %19 = vsyncpa [#allocation10], 0
    %20 = vsyncpa [#allocation13], 0
    loop: start=0, step=1, limit=6
    $region2: #{caption_features.1} parent=1 // loop_pre_header
      _
    $region3: #{caption_features.1} parent=1 // loop_header
      %s22 = sphi 0, %s26
      %p23 = scmp.ge.s32.totalorder %s22, 6
      %s30 = sphi 0, %s30
      %s32 = sphi 0, %s30
      %s33 = sphi 0, %s32
      %s47 = sphi 0, %s33
      %s51 = sphi 0, %s51
      %s53 = sphi 0, %s51
      %s54 = sphi 0, %s53
      %s68 = sphi 0, %s54
      %s74 = sphi 0, %s76
      %s77 = sphi 0, %s74
      %s78 = sphi 0, %s77
      %s94 = sphi 0, %s78
      %s100 = sphi 0, %s102
      %s103 = sphi 0, %s100
      %s104 = sphi 0, %s103
      %s120 = sphi 0, %s104
      %s124 = sphi 0, %s124
      %s126 = sphi 0, %s124
      %s127 = sphi 0, %s126
      %s141 = sphi 0, %s127
      %s145 = sphi 0, %s145
      %s147 = sphi 0, %s145
      %s148 = sphi 0, %s147
      %s162 = sphi 0, %s148
      %s166 = sphi 0, %s166
      %s168 = sphi 0, %s166
      %s169 = sphi 0, %s168
      %s183 = sphi 0, %s169
      %s187 = sphi 0, %s187
      %s189 = sphi 0, %s187
      %s190 = sphi 0, %s189
      %s204 = sphi 0, %s190
      %s208 = sphi 0, %s208
      %s210 = sphi 0, %s208
      %s211 = sphi 0, %s210
      %s225 = sphi 0, %s211
      %s229 = sphi 0, %s229
      %s231 = sphi 0, %s229
      %s232 = sphi 0, %s231
      %s246 = sphi 0, %s232
    $region4: #{caption_features.1} parent=1 // loop_header_branch
      %25 = sbr.rel (%p23) target = $region8
    $region5: #{caption_features.1} parent=1 // loop_body
      %s27 = ssub.s32 %s22, 1
      %s28 = ssub.s32 %s22, 2
      %s29 = sadd.s32 %s22, 1
      %s31 = sadd.s32 %s30, 1
      %p34 = scmp.eq.s32.totalorder %s22, 3
      %p35 = scmp.ne.s32.totalorder %s30, %s32
      %p36 = scmp.eq.s32.totalorder %s22, 0
      %p37 = por %p35, %p36
      %p38 = scmp.ne.s32.totalorder %s30, %s32
      %p39 = scmp.eq.s32.totalorder %s27, 3
      %p40 = por %p38, %p39
      %p41 = scmp.ne.s32.totalorder %s32, %s33
      %p42 = scmp.eq.s32.totalorder %s27, 0
      %p43 = por %p41, %p42
      %p44 = scmp.ne.s32.totalorder %s32, %s33
      %p45 = scmp.eq.s32.totalorder %s28, 3
      %p46 = por %p44, %p45
      %p48 = scmp.ne.s32.totalorder %s33, %s47
      %p49 = scmp.eq.s32.totalorder %s28, 0
      %p50 = por %p48, %p49
      %s52 = sadd.s32 %s51, 1
      %p55 = scmp.eq.s32.totalorder %s22, 3
      %p56 = scmp.ne.s32.totalorder %s51, %s53
      %p57 = scmp.eq.s32.totalorder %s22, 0
      %p58 = por %p56, %p57
      %p59 = scmp.ne.s32.totalorder %s51, %s53
      %p60 = scmp.eq.s32.totalorder %s27, 3
      %p61 = por %p59, %p60
      %p62 = scmp.ne.s32.totalorder %s53, %s54
      %p63 = scmp.eq.s32.totalorder %s27, 0
      %p64 = por %p62, %p63
      %p65 = scmp.ne.s32.totalorder %s53, %s54
      %p66 = scmp.eq.s32.totalorder %s28, 3
      %p67 = por %p65, %p66
      %p69 = scmp.ne.s32.totalorder %s54, %s68
      %p70 = scmp.eq.s32.totalorder %s28, 0
      %p71 = por %p69, %p70
      %s72 = ssub.s32 %s22, %s29
      %p73 = scmp.eq.s32.totalorder %s72, 0
      %s75 = sadd.s32 %s74, 1
      %s76 = scalar_select %p73, %s74, %s75
      %p79 = pneg %p73
      %p80 = scmp.eq.s32.totalorder %s22, 3
      %p81 = por %p79, %p80
      %p82 = scmp.ne.s32.totalorder %s74, %s77
      %p83 = scmp.eq.s32.totalorder %s22, 0
      %p84 = por %p82, %p83
      %p85 = scmp.ne.s32.totalorder %s74, %s77
      %p86 = scmp.eq.s32.totalorder %s27, 3
      %p87 = por %p85, %p86
      %p88 = scmp.ne.s32.totalorder %s77, %s78
      %p89 = scmp.eq.s32.totalorder %s27, 0
      %p90 = por %p88, %p89
      %p91 = scmp.ne.s32.totalorder %s77, %s78
      %p92 = scmp.eq.s32.totalorder %s28, 3
      %p93 = por %p91, %p92
      %p95 = scmp.ne.s32.totalorder %s78, %s94
      %p96 = scmp.eq.s32.totalorder %s28, 0
      %p97 = por %p95, %p96
      %s98 = ssub.s32 %s22, %s29
      %p99 = scmp.eq.s32.totalorder %s98, 0
      %s101 = sadd.s32 %s100, 1
      %s102 = scalar_select %p99, %s100, %s101
      %p105 = pneg %p99
      %p106 = scmp.eq.s32.totalorder %s22, 3
      %p107 = por %p105, %p106
      %p108 = scmp.ne.s32.totalorder %s100, %s103
      %p109 = scmp.eq.s32.totalorder %s22, 0
      %p110 = por %p108, %p109
      %p111 = scmp.ne.s32.totalorder %s100, %s103
      %p112 = scmp.eq.s32.totalorder %s27, 3
      %p113 = por %p111, %p112
      %p114 = scmp.ne.s32.totalorder %s103, %s104
      %p115 = scmp.eq.s32.totalorder %s27, 0
      %p116 = por %p114, %p115
      %p117 = scmp.ne.s32.totalorder %s103, %s104
      %p118 = scmp.eq.s32.totalorder %s28, 3
      %p119 = por %p117, %p118
      %p121 = scmp.ne.s32.totalorder %s104, %s120
      %p122 = scmp.eq.s32.totalorder %s28, 0
      %p123 = por %p121, %p122
      %s125 = sadd.s32 %s124, 1
      %p128 = scmp.eq.s32.totalorder %s22, 3
      %p129 = scmp.ne.s32.totalorder %s124, %s126
      %p130 = scmp.eq.s32.totalorder %s22, 0
      %p131 = por %p129, %p130
      %p132 = scmp.ne.s32.totalorder %s124, %s126
      %p133 = scmp.eq.s32.totalorder %s27, 3
      %p134 = por %p132, %p133
      %p135 = scmp.ne.s32.totalorder %s126, %s127
      %p136 = scmp.eq.s32.totalorder %s27, 0
      %p137 = por %p135, %p136
      %p138 = scmp.ne.s32.totalorder %s126, %s127
      %p139 = scmp.eq.s32.totalorder %s28, 3
      %p140 = por %p138, %p139
      %p142 = scmp.ne.s32.totalorder %s127, %s141
      %p143 = scmp.eq.s32.totalorder %s28, 0
      %p144 = por %p142, %p143
      %s146 = sadd.s32 %s145, 1
      %p149 = scmp.eq.s32.totalorder %s22, 3
      %p150 = scmp.ne.s32.totalorder %s145, %s147
      %p151 = scmp.eq.s32.totalorder %s22, 0
      %p152 = por %p150, %p151
      %p153 = scmp.ne.s32.totalorder %s145, %s147
      %p154 = scmp.eq.s32.totalorder %s27, 3
      %p155 = por %p153, %p154
      %p156 = scmp.ne.s32.totalorder %s147, %s148
      %p157 = scmp.eq.s32.totalorder %s27, 0
      %p158 = por %p156, %p157
      %p159 = scmp.ne.s32.totalorder %s147, %s148
      %p160 = scmp.eq.s32.totalorder %s28, 3
      %p161 = por %p159, %p160
      %p163 = scmp.ne.s32.totalorder %s148, %s162
      %p164 = scmp.eq.s32.totalorder %s28, 0
      %p165 = por %p163, %p164
      %s167 = sadd.s32 %s166, 1
      %p170 = scmp.eq.s32.totalorder %s22, 3
      %p171 = scmp.ne.s32.totalorder %s166, %s168
      %p172 = scmp.eq.s32.totalorder %s22, 0
      %p173 = por %p171, %p172
      %p174 = scmp.ne.s32.totalorder %s166, %s168
      %p175 = scmp.eq.s32.totalorder %s27, 3
      %p176 = por %p174, %p175
      %p177 = scmp.ne.s32.totalorder %s168, %s169
      %p178 = scmp.eq.s32.totalorder %s27, 0
      %p179 = por %p177, %p178
      %p180 = scmp.ne.s32.totalorder %s168, %s169
      %p181 = scmp.eq.s32.totalorder %s28, 3
      %p182 = por %p180, %p181
      %p184 = scmp.ne.s32.totalorder %s169, %s183
      %p185 = scmp.eq.s32.totalorder %s28, 0
      %p186 = por %p184, %p185
      %s188 = sadd.s32 %s187, 1
      %p191 = scmp.eq.s32.totalorder %s22, 3
      %p192 = scmp.ne.s32.totalorder %s187, %s189
      %p193 = scmp.eq.s32.totalorder %s22, 0
      %p194 = por %p192, %p193
      %p195 = scmp.ne.s32.totalorder %s187, %s189
      %p196 = scmp.eq.s32.totalorder %s27, 3
      %p197 = por %p195, %p196
      %p198 = scmp.ne.s32.totalorder %s189, %s190
      %p199 = scmp.eq.s32.totalorder %s27, 0
      %p200 = por %p198, %p199
      %p201 = scmp.ne.s32.totalorder %s189, %s190
      %p202 = scmp.eq.s32.totalorder %s28, 3
      %p203 = por %p201, %p202
      %p205 = scmp.ne.s32.totalorder %s190, %s204
      %p206 = scmp.eq.s32.totalorder %s28, 0
      %p207 = por %p205, %p206
      %s209 = sadd.s32 %s208, 1
      %p212 = scmp.eq.s32.totalorder %s22, 3
      %p213 = scmp.ne.s32.totalorder %s208, %s210
      %p214 = scmp.eq.s32.totalorder %s22, 0
      %p215 = por %p213, %p214
      %p216 = scmp.ne.s32.totalorder %s208, %s210
      %p217 = scmp.eq.s32.totalorder %s27, 3
      %p218 = por %p216, %p217
      %p219 = scmp.ne.s32.totalorder %s210, %s211
      %p220 = scmp.eq.s32.totalorder %s27, 0
      %p221 = por %p219, %p220
      %p222 = scmp.ne.s32.totalorder %s210, %s211
      %p223 = scmp.eq.s32.totalorder %s28, 3
      %p224 = por %p222, %p223
      %p226 = scmp.ne.s32.totalorder %s211, %s225
      %p227 = scmp.eq.s32.totalorder %s28, 0
      %p228 = por %p226, %p227
      %s230 = sadd.s32 %s229, 1
      %p233 = scmp.eq.s32.totalorder %s22, 3
      %p234 = scmp.ne.s32.totalorder %s229, %s231
      %p235 = scmp.eq.s32.totalorder %s22, 0
      %p236 = por %p234, %p235
      %p237 = scmp.ne.s32.totalorder %s229, %s231
      %p238 = scmp.eq.s32.totalorder %s27, 3
      %p239 = por %p237, %p238
      %p240 = scmp.ne.s32.totalorder %s231, %s232
      %p241 = scmp.eq.s32.totalorder %s27, 0
      %p242 = por %p240, %p241
      %p243 = scmp.ne.s32.totalorder %s231, %s232
      %p244 = scmp.eq.s32.totalorder %s28, 3
      %p245 = por %p243, %p244
      %p247 = scmp.ne.s32.totalorder %s232, %s246
      %p248 = scmp.eq.s32.totalorder %s28, 0
      %p249 = por %p247, %p248
      %p250 = scmp.le.s32.totalorder 1, %s22
      %p251 = scmp.lt.s32.totalorder %s22, 5
      %p252 = pnand %p250, %p251
      %p253 = pneg %p252
      // Predicated region
      $region9: #{caption_features.1} parent=5 // pred_check
        _
      $region10: #{caption_features.1} parent=5 // pred_check_branch
        %255 = sbr.rel (%p252) target = $region12
      $region11: #{caption_features.1} parent=5 // pred_region
        %s256 = ssub.s32 %s22, 1
        // Predicated region
        $region13: #{caption_features.1} parent=11 // pred_check
          %p257 = pneg %p43
        $region14: #{caption_features.1} parent=11 // pred_check_branch
          %259 = sbr.rel (%p257) target = $region16
        $region15: #{caption_features.1} parent=11 // pred_region
          _
        $region16: #{caption_features.1} parent=11 // pred_fallthru
          _
        // Predicated region
        $region17: #{caption_features.1} parent=11 // pred_check
          %p260 = pneg %p64
        $region18: #{caption_features.1} parent=11 // pred_check_branch
          %262 = sbr.rel (%p260) target = $region20
        $region19: #{caption_features.1} parent=11 // pred_region
          %s264 = ssub.s32 256, 256
          %265 = vsyncadd [#allocation4], %s264
          %s266 = sshll.u32 [#allocation3], 4
          %s267 = int_to_ptr.vmem [resolvable:$true] %s266
          %272 = dma.hbm_to_vmem [thread:$0]  %s1, 256, %s267, [#allocation4], 128, 128, 8
        $region20: #{caption_features.1} parent=11 // pred_fallthru
          _
        // Predicated region
        $region21: #{caption_features.1} parent=11 // pred_check
          %p273 = pneg %p137
        $region22: #{caption_features.1} parent=11 // pred_check_branch
          %275 = sbr.rel (%p273) target = $region24
        $region23: #{caption_features.1} parent=11 // pred_region
          %s277 = ssub.s32 4096, 4096
          %278 = vsyncadd [#allocation7], %s277
          %s279 = sshll.u32 [#allocation8], 4
          %s280 = int_to_ptr.vmem [resolvable:$true] %s279
          %285 = dma.hbm_to_vmem [thread:$0]  %s4, 4096, %s280, [#allocation7], 64, 64, 4
        $region24: #{caption_features.1} parent=11 // pred_fallthru
          _
        // Predicated region
        $region25: #{caption_features.1} parent=11 // pred_check
          %p286 = pneg %p158
        $region26: #{caption_features.1} parent=11 // pred_check_branch
          %288 = sbr.rel (%p286) target = $region28
        $region27: #{caption_features.1} parent=11 // pred_region
          %s290 = ssub.s32 256, 256
          %291 = vsyncadd [#allocation10], %s290
          %s293 = sshll.u32 [#allocation9], 4
          %s294 = int_to_ptr.vmem [resolvable:$true] %s293
          %296 = dma.hbm_to_vmem [thread:$0]  %s5, 256, %s294, [#allocation10]
        $region28: #{caption_features.1} parent=11 // pred_fallthru
          _
        // Predicated region
        $region29: #{caption_features.1} parent=11 // pred_check
          %p297 = pneg %p179
        $region30: #{caption_features.1} parent=11 // pred_check_branch
          %299 = sbr.rel (%p297) target = $region32
        $region31: #{caption_features.1} parent=11 // pred_region
          %s301 = ssub.s32 512, 512
          %302 = vsyncadd [#allocation10], %s301
          %s303 = sshll.u32 [#allocation11], 4
          %s304 = int_to_ptr.vmem [resolvable:$true] %s303
          %309 = dma.hbm_to_vmem [thread:$0]  %s6, 512, %s304, [#allocation10], 128, 128, 8
        $region32: #{caption_features.1} parent=11 // pred_fallthru
          _
        // Predicated region
        $region33: #{caption_features.1} parent=11 // pred_check
          %p310 = pneg %p200
        $region34: #{caption_features.1} parent=11 // pred_check_branch
          %312 = sbr.rel (%p310) target = $region36
        $region35: #{caption_features.1} parent=11 // pred_region
          %s314 = ssub.s32 64, 64
          %315 = vsyncadd [#allocation13], %s314
          %s317 = sshll.u32 [#allocation12], 4
          %s318 = int_to_ptr.vmem [resolvable:$true] %s317
          %320 = dma.hbm_to_vmem [thread:$0]  %s7, 64, %s318, [#allocation13]
        $region36: #{caption_features.1} parent=11 // pred_fallthru
          _
      $region12: #{caption_features.1} parent=5 // pred_fallthru
        _
      %p321 = scmp.lt.s32.totalorder %s22, 4
      // Predicated region
      $region37: #{caption_features.1} parent=5 // pred_check
        %p322 = pneg %p321
      $region38: #{caption_features.1} parent=5 // pred_check_branch
        %324 = sbr.rel (%p322) target = $region40
      $region39: #{caption_features.1} parent=5 // pred_region
        // Predicated region
        $region41: #{caption_features.1} parent=39 // pred_check
          %p325 = pneg %p84
        $region42: #{caption_features.1} parent=39 // pred_check_branch
          %327 = sbr.rel (%p325) target = $region44
        $region43: #{caption_features.1} parent=39 // pred_region
          %s328 = sand.u32 %s74, 1
          %s329 = sand.u32 %s74, 1
          %s330 = smul.addr %s329, 32
          %s331 = scalar_lea.vmem [#allocation5], %s330
          %s332 = smul.u32 4, %s22
          %s333 = smul.addr %s332, 4
          %s334 = scalar_lea.vmem %s2, %s333
          // Predicated region
          $region45: #{caption_features.1} parent=43 // pred_check
            _
          $region46: #{caption_features.1} parent=43 // pred_check_branch
            %336 = sbr.rel (0) target = $region48
          $region47: #{caption_features.1} parent=43 // pred_region
            // Predicated region
            $region49: #{caption_features.1} parent=47 // pred_check
              _
            $region50: #{caption_features.1} parent=47 // pred_check_branch
              %338 = sbr.rel (0) target = $region52
            $region51: #{caption_features.1} parent=47 // pred_region
              loop: start=0, step=1, limit=1
              $region53: #{caption_features.1} parent=51 // loop_pre_header
                _
              $region54: #{caption_features.1} parent=51 // loop_header
                %s340 = sphi 0, %s344
                %p341 = scmp.ge.s32.totalorder %s340, 1
                %s345 = sphi %s334, %s334
                %s346 = sphi %s331, %s331
              $region55: #{caption_features.1} parent=51 // loop_header_branch
                %343 = sbr.rel (%p341) target = $region59
              $region56: #{caption_features.1} parent=51 // loop_body
                %v347 = vld [vmem:[%s345] sm:$0xff]
                %348 = vst [vmem:[%s346] sm:$0xff] %v347
                %v349 = vld [vmem:[%s345 + $0x8] sm:$0xff]
                %350 = vst [vmem:[%s346 + $0x8] sm:$0xff] %v349
                %v351 = vld [vmem:[%s345 + $0x40] sm:$0xff]
                %352 = vst [vmem:[%s346 + $0x10] sm:$0xff] %v351
                %v353 = vld [vmem:[%s345 + $0x48] sm:$0xff]
                %354 = vst [vmem:[%s346 + $0x18] sm:$0xff] %v353
              $region57: #{caption_features.1} parent=51 // loop_footer
                %s344 = sadd.s32 1, %s340
              $region58: #{caption_features.1} parent=51 // loop_footer_branch
                %339 = sbr.rel target = $region54
              $region59: #{caption_features.1} parent=51 // loop_exit
                _
            $region52: #{caption_features.1} parent=47 // pred_fallthru
              _
            // Predicated region
            $region60: #{caption_features.1} parent=47 // pred_check
              _
            $region61: #{caption_features.1} parent=47 // pred_check_branch
              %356 = sbr.rel target = $region63
            $region62: #{caption_features.1} parent=47 // pred_region
              _
            $region63: #{caption_features.1} parent=47 // pred_fallthru
              _
          $region48: #{caption_features.1} parent=43 // pred_fallthru
            _
          %357 = vnop
        $region44: #{caption_features.1} parent=39 // pred_fallthru
          _
        // Predicated region
        $region64: #{caption_features.1} parent=39 // pred_check
          %p358 = pneg %p110
        $region65: #{caption_features.1} parent=39 // pred_check_branch
          %360 = sbr.rel (%p358) target = $region67
        $region66: #{caption_features.1} parent=39 // pred_region
          %s361 = sand.u32 %s22, 1
          %s362 = scalar_lea.sflag [#allocation7], %s361
          %s363 = sand.u32 %s100, 1
          %s364 = smul.addr %s363, 1024
          %s365 = scalar_lea.vmem [#allocation6], %s364
          %s366 = smul.u32 64, %s22
          %s368 = ssub.s32 16384, 16384
          %369 = vsyncadd %s362, %s368
          %s370 = smul.addr %s366, 4
          %s371 = smul.addr %s370, 64
          %s372 = scalar_lea.hbm %s3, %s371
          %s373 = sshll.u32 %s365, 4
          %s374 = int_to_ptr.vmem [resolvable:$true] %s373
          %379 = dma.hbm_to_vmem [thread:$0]  %s372, 16384, %s374, %s362, 256, 256, 16
        $region67: #{caption_features.1} parent=39 // pred_fallthru
          _
      $region40: #{caption_features.1} parent=5 // pred_fallthru
        _
      %p380 = scmp.le.s32.totalorder 1, %s22
      %p381 = scmp.lt.s32.totalorder %s22, 5
      %p382 = pnand %p380, %p381
      %p383 = pneg %p382
      // Predicated region
      $region68: #{caption_features.1} parent=5 // pred_check
        _
      $region69: #{caption_features.1} parent=5 // pred_check_branch
        %385 = sbr.rel (%p382) target = $region71
      $region70: #{caption_features.1} parent=5 // pred_region
        %s386 = ssub.s32 %s22, 1
        // Predicated region
        $region72: #{caption_features.1} parent=70 // pred_check
          %p387 = pneg %p64
        $region73: #{caption_features.1} parent=70 // pred_check_branch
          %389 = sbr.rel (%p387) target = $region75
        $region74: #{caption_features.1} parent=70 // pred_region
          %390 = dma.done [#allocation4], 256
        $region75: #{caption_features.1} parent=70 // pred_fallthru
          _
        %s391 = sand.u32 %s77, 1
        %s392 = sand.u32 %s77, 1
        %s393 = smul.addr %s392, 32
        %s394 = scalar_lea.vmem [#allocation5], %s393
        // Predicated region
        $region76: #{caption_features.1} parent=70 // pred_check
          %p395 = pneg %p90
        $region77: #{caption_features.1} parent=70 // pred_check_branch
          %397 = sbr.rel (%p395) target = $region79
        $region78: #{caption_features.1} parent=70 // pred_region
          _
        $region79: #{caption_features.1} parent=70 // pred_fallthru
          _
        %s398 = sand.u32 %s27, 1
        %s399 = scalar_lea.sflag [#allocation7], %s398
        %s400 = sand.u32 %s103, 1
        %s401 = smul.addr %s400, 1024
        %s402 = scalar_lea.vmem [#allocation6], %s401
        // Predicated region
        $region80: #{caption_features.1} parent=70 // pred_check
          %p403 = pneg %p116
        $region81: #{caption_features.1} parent=70 // pred_check_branch
          %405 = sbr.rel (%p403) target = $region83
        $region82: #{caption_features.1} parent=70 // pred_region
          %406 = dma.done %s399, 16384
        $region83: #{caption_features.1} parent=70 // pred_fallthru
          _
        // Predicated region
        $region84: #{caption_features.1} parent=70 // pred_check
          %p407 = pneg %p137
        $region85: #{caption_features.1} parent=70 // pred_check_branch
          %409 = sbr.rel (%p407) target = $region87
        $region86: #{caption_features.1} parent=70 // pred_region
          %410 = dma.done [#allocation7], 4096
        $region87: #{caption_features.1} parent=70 // pred_fallthru
          _
        // Predicated region
        $region88: #{caption_features.1} parent=70 // pred_check
          %p411 = pneg %p158
        $region89: #{caption_features.1} parent=70 // pred_check_branch
          %413 = sbr.rel (%p411) target = $region91
        $region90: #{caption_features.1} parent=70 // pred_region
          %414 = dma.done [#allocation10], 256
        $region91: #{caption_features.1} parent=70 // pred_fallthru
          _
        // Predicated region
        $region92: #{caption_features.1} parent=70 // pred_check
          %p415 = pneg %p179
        $region93: #{caption_features.1} parent=70 // pred_check_branch
          %417 = sbr.rel (%p415) target = $region95
        $region94: #{caption_features.1} parent=70 // pred_region
          %418 = dma.done [#allocation10], 512
        $region95: #{caption_features.1} parent=70 // pred_fallthru
          _
        // Predicated region
        $region96: #{caption_features.1} parent=70 // pred_check
          %p419 = pneg %p200
        $region97: #{caption_features.1} parent=70 // pred_check_branch
          %421 = sbr.rel (%p419) target = $region99
        $region98: #{caption_features.1} parent=70 // pred_region
          %422 = dma.done [#allocation13], 64
        $region99: #{caption_features.1} parent=70 // pred_fallthru
          _
        %p423 = pneg %p43
        %p424 = pneg %p40
        %p425 = pneg %p64
        %p426 = pneg %p61
        %s427 = sand.u32 %s77, 1
        %s428 = sand.u32 %s77, 1
        %s429 = smul.addr %s428, 32
        %s430 = scalar_lea.vmem [#allocation5], %s429
        %p431 = pneg %p90
        %p432 = pneg %p87
        %s433 = sand.u32 %s27, 1
        %s434 = scalar_lea.sflag [#allocation7], %s433
        %s435 = sand.u32 %s103, 1
        %s436 = smul.addr %s435, 1024
        %s437 = scalar_lea.vmem [#allocation6], %s436
        %p438 = pneg %p116
        %p439 = pneg %p113
        %p440 = pneg %p137
        %p441 = pneg %p134
        %p442 = pneg %p158
        %p443 = pneg %p155
        %p444 = pneg %p179
        %p445 = pneg %p176
        %p446 = pneg %p200
        %p447 = pneg %p197
        %p448 = pneg %p221
        %p449 = pneg %p218
        %p450 = pneg %p242
        %p451 = pneg %p239
        %s452 = smul.u32 4, %s27
        %s453 = smul.u32 64, %s27
        %p455 = scmp.eq.s32.totalorder %s27, 0
        // Predicated region
        $region100: #{caption_features.1} parent=70 // pred_check
          %p456 = pneg %p455
        $region101: #{caption_features.1} parent=70 // pred_check_branch
          %458 = sbr.rel (%p456) target = $region103
        $region102: #{caption_features.1} parent=70 // pred_region
          %459 = vst [vmem:[#allocation2] sm:$0xff] 0.0
          %460 = vst [vmem:[#allocation2 + $0x8] sm:$0xff] 0.0
          %461 = vst [vmem:[#allocation2 + $0x10] sm:$0xff] 0.0
          %462 = vst [vmem:[#allocation2 + $0x18] sm:$0xff] 0.0
          %463 = vst [vmem:[#allocation2 + $0x20] sm:$0xff] 0.0
          %464 = vst [vmem:[#allocation2 + $0x28] sm:$0xff] 0.0
          %465 = vst [vmem:[#allocation2 + $0x30] sm:$0xff] 0.0
          %466 = vst [vmem:[#allocation2 + $0x38] sm:$0xff] 0.0
        $region103: #{caption_features.1} parent=70 // pred_fallthru
          _
        %v467 = vld [vmem:[#allocation2] sm:$0xff]
        %v468 = vld [vmem:[#allocation2 + $0x8] sm:$0xff]
        %v469 = vld [vmem:[#allocation2 + $0x10] sm:$0xff]
        %v470 = vld [vmem:[#allocation2 + $0x18] sm:$0xff]
        %v471 = vld [vmem:[#allocation2 + $0x20] sm:$0xff]
        %v472 = vld [vmem:[#allocation2 + $0x28] sm:$0xff]
        %v473 = vld [vmem:[#allocation2 + $0x30] sm:$0xff]
        %v474 = vld [vmem:[#allocation2 + $0x38] sm:$0xff]
        %v475 = vld [vmem:[%s394] sm:$0xff]
        %v476 = vld [vmem:[%s394 + $0x8] sm:$0xff]
        %v477 = vld [vmem:[%s394 + $0x10] sm:$0xff]
        %v478 = vld [vmem:[%s394 + $0x18] sm:$0xff]
        %v479 = vld [vmem:[%s402] sm:$0xff]
        %v480 = vld [vmem:[%s402 + $0x8] sm:$0xff]
        %v481 = vld [vmem:[%s402 + $0x10] sm:$0xff]
        %v482 = vld [vmem:[%s402 + $0x18] sm:$0xff]
        %v483 = vld [vmem:[%s402 + $0x20] sm:$0xff]
        %v484 = vld [vmem:[%s402 + $0x28] sm:$0xff]
        %v485 = vld [vmem:[%s402 + $0x30] sm:$0xff]
        %v486 = vld [vmem:[%s402 + $0x38] sm:$0xff]
        %v487 = vld [vmem:[%s402 + $0x40] sm:$0xff]
        %v488 = vld [vmem:[%s402 + $0x48] sm:$0xff]
        %v489 = vld [vmem:[%s402 + $0x50] sm:$0xff]
        %v490 = vld [vmem:[%s402 + $0x58] sm:$0xff]
        %v491 = vld [vmem:[%s402 + $0x60] sm:$0xff]
        %v492 = vld [vmem:[%s402 + $0x68] sm:$0xff]
        %v493 = vld [vmem:[%s402 + $0x70] sm:$0xff]
        %v494 = vld [vmem:[%s402 + $0x78] sm:$0xff]
        %v495 = vld [vmem:[%s402 + $0x80] sm:$0xff]
        %v496 = vld [vmem:[%s402 + $0x88] sm:$0xff]
        %v497 = vld [vmem:[%s402 + $0x90] sm:$0xff]
        %v498 = vld [vmem:[%s402 + $0x98] sm:$0xff]
        %v499 = vld [vmem:[%s402 + $0xa0] sm:$0xff]
        %v500 = vld [vmem:[%s402 + $0xa8] sm:$0xff]
        %v501 = vld [vmem:[%s402 + $0xb0] sm:$0xff]
        %v502 = vld [vmem:[%s402 + $0xb8] sm:$0xff]
        %v503 = vld [vmem:[%s402 + $0xc0] sm:$0xff]
        %v504 = vld [vmem:[%s402 + $0xc8] sm:$0xff]
        %v505 = vld [vmem:[%s402 + $0xd0] sm:$0xff]
        %v506 = vld [vmem:[%s402 + $0xd8] sm:$0xff]
        %v507 = vld [vmem:[%s402 + $0xe0] sm:$0xff]
        %v508 = vld [vmem:[%s402 + $0xe8] sm:$0xff]
        %v509 = vld [vmem:[%s402 + $0xf0] sm:$0xff]
        %v510 = vld [vmem:[%s402 + $0xf8] sm:$0xff]
        %v511 = vld [vmem:[%s402 + $0x100] sm:$0xff]
        %v512 = vld [vmem:[%s402 + $0x108] sm:$0xff]
        %v513 = vld [vmem:[%s402 + $0x110] sm:$0xff]
        %v514 = vld [vmem:[%s402 + $0x118] sm:$0xff]
        %v515 = vld [vmem:[%s402 + $0x120] sm:$0xff]
        %v516 = vld [vmem:[%s402 + $0x128] sm:$0xff]
        %v517 = vld [vmem:[%s402 + $0x130] sm:$0xff]
        %v518 = vld [vmem:[%s402 + $0x138] sm:$0xff]
        %v519 = vld [vmem:[%s402 + $0x140] sm:$0xff]
        %v520 = vld [vmem:[%s402 + $0x148] sm:$0xff]
        %v521 = vld [vmem:[%s402 + $0x150] sm:$0xff]
        %v522 = vld [vmem:[%s402 + $0x158] sm:$0xff]
        %v523 = vld [vmem:[%s402 + $0x160] sm:$0xff]
        %v524 = vld [vmem:[%s402 + $0x168] sm:$0xff]
        %v525 = vld [vmem:[%s402 + $0x170] sm:$0xff]
        %v526 = vld [vmem:[%s402 + $0x178] sm:$0xff]
        %v527 = vld [vmem:[%s402 + $0x180] sm:$0xff]
        %v528 = vld [vmem:[%s402 + $0x188] sm:$0xff]
        %v529 = vld [vmem:[%s402 + $0x190] sm:$0xff]
        %v530 = vld [vmem:[%s402 + $0x198] sm:$0xff]
        %v531 = vld [vmem:[%s402 + $0x1a0] sm:$0xff]
        %v532 = vld [vmem:[%s402 + $0x1a8] sm:$0xff]
        %v533 = vld [vmem:[%s402 + $0x1b0] sm:$0xff]
        %v534 = vld [vmem:[%s402 + $0x1b8] sm:$0xff]
        %v535 = vld [vmem:[%s402 + $0x1c0] sm:$0xff]
        %v536 = vld [vmem:[%s402 + $0x1c8] sm:$0xff]
        %v537 = vld [vmem:[%s402 + $0x1d0] sm:$0xff]
        %v538 = vld [vmem:[%s402 + $0x1d8] sm:$0xff]
        %v539 = vld [vmem:[%s402 + $0x1e0] sm:$0xff]
        %v540 = vld [vmem:[%s402 + $0x1e8] sm:$0xff]
        %v541 = vld [vmem:[%s402 + $0x1f0] sm:$0xff]
        %v542 = vld [vmem:[%s402 + $0x1f8] sm:$0xff]
        %v543 = vld [vmem:[%s402 + $0x200] sm:$0xff]
        %v544 = vld [vmem:[%s402 + $0x208] sm:$0xff]
        %v545 = vld [vmem:[%s402 + $0x210] sm:$0xff]
        %v546 = vld [vmem:[%s402 + $0x218] sm:$0xff]
        %v547 = vld [vmem:[%s402 + $0x220] sm:$0xff]
        %v548 = vld [vmem:[%s402 + $0x228] sm:$0xff]
        %v549 = vld [vmem:[%s402 + $0x230] sm:$0xff]
        %v550 = vld [vmem:[%s402 + $0x238] sm:$0xff]
        %v551 = vld [vmem:[%s402 + $0x240] sm:$0xff]
        %v552 = vld [vmem:[%s402 + $0x248] sm:$0xff]
        %v553 = vld [vmem:[%s402 + $0x250] sm:$0xff]
        %v554 = vld [vmem:[%s402 + $0x258] sm:$0xff]
        %v555 = vld [vmem:[%s402 + $0x260] sm:$0xff]
        %v556 = vld [vmem:[%s402 + $0x268] sm:$0xff]
        %v557 = vld [vmem:[%s402 + $0x270] sm:$0xff]
        %v558 = vld [vmem:[%s402 + $0x278] sm:$0xff]
        %v559 = vld [vmem:[%s402 + $0x280] sm:$0xff]
        %v560 = vld [vmem:[%s402 + $0x288] sm:$0xff]
        %v561 = vld [vmem:[%s402 + $0x290] sm:$0xff]
        %v562 = vld [vmem:[%s402 + $0x298] sm:$0xff]
        %v563 = vld [vmem:[%s402 + $0x2a0] sm:$0xff]
        %v564 = vld [vmem:[%s402 + $0x2a8] sm:$0xff]
        %v565 = vld [vmem:[%s402 + $0x2b0] sm:$0xff]
        %v566 = vld [vmem:[%s402 + $0x2b8] sm:$0xff]
        %v567 = vld [vmem:[%s402 + $0x2c0] sm:$0xff]
        %v568 = vld [vmem:[%s402 + $0x2c8] sm:$0xff]
        %v569 = vld [vmem:[%s402 + $0x2d0] sm:$0xff]
        %v570 = vld [vmem:[%s402 + $0x2d8] sm:$0xff]
        %v571 = vld [vmem:[%s402 + $0x2e0] sm:$0xff]
        %v572 = vld [vmem:[%s402 + $0x2e8] sm:$0xff]
        %v573 = vld [vmem:[%s402 + $0x2f0] sm:$0xff]
        %v574 = vld [vmem:[%s402 + $0x2f8] sm:$0xff]
        %v575 = vld [vmem:[%s402 + $0x300] sm:$0xff]
        %v576 = vld [vmem:[%s402 + $0x308] sm:$0xff]
        %v577 = vld [vmem:[%s402 + $0x310] sm:$0xff]
        %v578 = vld [vmem:[%s402 + $0x318] sm:$0xff]
        %v579 = vld [vmem:[%s402 + $0x320] sm:$0xff]
        %v580 = vld [vmem:[%s402 + $0x328] sm:$0xff]
        %v581 = vld [vmem:[%s402 + $0x330] sm:$0xff]
        %v582 = vld [vmem:[%s402 + $0x338] sm:$0xff]
        %v583 = vld [vmem:[%s402 + $0x340] sm:$0xff]
        %v584 = vld [vmem:[%s402 + $0x348] sm:$0xff]
        %v585 = vld [vmem:[%s402 + $0x350] sm:$0xff]
        %v586 = vld [vmem:[%s402 + $0x358] sm:$0xff]
        %v587 = vld [vmem:[%s402 + $0x360] sm:$0xff]
        %v588 = vld [vmem:[%s402 + $0x368] sm:$0xff]
        %v589 = vld [vmem:[%s402 + $0x370] sm:$0xff]
        %v590 = vld [vmem:[%s402 + $0x378] sm:$0xff]
        %v591 = vld [vmem:[%s402 + $0x380] sm:$0xff]
        %v592 = vld [vmem:[%s402 + $0x388] sm:$0xff]
        %v593 = vld [vmem:[%s402 + $0x390] sm:$0xff]
        %v594 = vld [vmem:[%s402 + $0x398] sm:$0xff]
        %v595 = vld [vmem:[%s402 + $0x3a0] sm:$0xff]
        %v596 = vld [vmem:[%s402 + $0x3a8] sm:$0xff]
        %v597 = vld [vmem:[%s402 + $0x3b0] sm:$0xff]
        %v598 = vld [vmem:[%s402 + $0x3b8] sm:$0xff]
        %v599 = vld [vmem:[%s402 + $0x3c0] sm:$0xff]
        %v600 = vld [vmem:[%s402 + $0x3c8] sm:$0xff]
        %v601 = vld [vmem:[%s402 + $0x3d0] sm:$0xff]
        %v602 = vld [vmem:[%s402 + $0x3d8] sm:$0xff]
        %v603 = vld [vmem:[%s402 + $0x3e0] sm:$0xff]
        %v604 = vld [vmem:[%s402 + $0x3e8] sm:$0xff]
        %v605 = vld [vmem:[%s402 + $0x3f0] sm:$0xff]
        %v606 = vld [vmem:[%s402 + $0x3f8] sm:$0xff]
        %v611 = vunpack.c.l.b16 %v475
        %v612 = vunpack.c.h.b16 %v475
        %v613 = vunpack.c.l.b16 %v476
        %v614 = vunpack.c.h.b16 %v476
        %v615 = vunpack.c.l.b16 %v477
        %v616 = vunpack.c.h.b16 %v477
        %v617 = vunpack.c.l.b16 %v478
        %v618 = vunpack.c.h.b16 %v478
        %v619 = vpack.c.b16 %v615, %v611
        %v620 = vpack.c.b16 %v616, %v612
        %v621 = vpack.c.b16 %v617, %v613
        %v622 = vpack.c.b16 %v618, %v614
        %v755 = vunpack.c.l.b16 %v479
        %v756 = vunpack.c.h.b16 %v479
        %v757 = vunpack.c.l.b16 %v480
        %v758 = vunpack.c.h.b16 %v480
        %v759 = vunpack.c.l.b16 %v481
        %v760 = vunpack.c.h.b16 %v481
        %v761 = vunpack.c.l.b16 %v482
        %v762 = vunpack.c.h.b16 %v482
        %v763 = vunpack.c.l.b16 %v483
        %v764 = vunpack.c.h.b16 %v483
        %v765 = vunpack.c.l.b16 %v484
        %v766 = vunpack.c.h.b16 %v484
        %v767 = vunpack.c.l.b16 %v485
        %v768 = vunpack.c.h.b16 %v485
        %v769 = vunpack.c.l.b16 %v486
        %v770 = vunpack.c.h.b16 %v486
        %v771 = vunpack.c.l.b16 %v487
        %v772 = vunpack.c.h.b16 %v487
        %v773 = vunpack.c.l.b16 %v488
        %v774 = vunpack.c.h.b16 %v488
        %v775 = vunpack.c.l.b16 %v489
        %v776 = vunpack.c.h.b16 %v489
        %v777 = vunpack.c.l.b16 %v490
        %v778 = vunpack.c.h.b16 %v490
        %v779 = vunpack.c.l.b16 %v491
        %v780 = vunpack.c.h.b16 %v491
        %v781 = vunpack.c.l.b16 %v492
        %v782 = vunpack.c.h.b16 %v492
        %v783 = vunpack.c.l.b16 %v493
        %v784 = vunpack.c.h.b16 %v493
        %v785 = vunpack.c.l.b16 %v494
        %v786 = vunpack.c.h.b16 %v494
        %v787 = vunpack.c.l.b16 %v495
        %v788 = vunpack.c.h.b16 %v495
        %v789 = vunpack.c.l.b16 %v496
        %v790 = vunpack.c.h.b16 %v496
        %v791 = vunpack.c.l.b16 %v497
        %v792 = vunpack.c.h.b16 %v497
        %v793 = vunpack.c.l.b16 %v498
        %v794 = vunpack.c.h.b16 %v498
        %v795 = vunpack.c.l.b16 %v499
        %v796 = vunpack.c.h.b16 %v499
        %v797 = vunpack.c.l.b16 %v500
        %v798 = vunpack.c.h.b16 %v500
        %v799 = vunpack.c.l.b16 %v501
        %v800 = vunpack.c.h.b16 %v501
        %v801 = vunpack.c.l.b16 %v502
        %v802 = vunpack.c.h.b16 %v502
        %v803 = vunpack.c.l.b16 %v503
        %v804 = vunpack.c.h.b16 %v503
        %v805 = vunpack.c.l.b16 %v504
        %v806 = vunpack.c.h.b16 %v504
        %v807 = vunpack.c.l.b16 %v505
        %v808 = vunpack.c.h.b16 %v505
        %v809 = vunpack.c.l.b16 %v506
        %v810 = vunpack.c.h.b16 %v506
        %v811 = vunpack.c.l.b16 %v507
        %v812 = vunpack.c.h.b16 %v507
        %v813 = vunpack.c.l.b16 %v508
        %v814 = vunpack.c.h.b16 %v508
        %v815 = vunpack.c.l.b16 %v509
        %v816 = vunpack.c.h.b16 %v509
        %v817 = vunpack.c.l.b16 %v510
        %v818 = vunpack.c.h.b16 %v510
        %v819 = vunpack.c.l.b16 %v511
        %v820 = vunpack.c.h.b16 %v511
        %v821 = vunpack.c.l.b16 %v512
        %v822 = vunpack.c.h.b16 %v512
        %v823 = vunpack.c.l.b16 %v513
        %v824 = vunpack.c.h.b16 %v513
        %v825 = vunpack.c.l.b16 %v514
        %v826 = vunpack.c.h.b16 %v514
        %v827 = vunpack.c.l.b16 %v515
        %v828 = vunpack.c.h.b16 %v515
        %v829 = vunpack.c.l.b16 %v516
        %v830 = vunpack.c.h.b16 %v516
        %v831 = vunpack.c.l.b16 %v517
        %v832 = vunpack.c.h.b16 %v517
        %v833 = vunpack.c.l.b16 %v518
        %v834 = vunpack.c.h.b16 %v518
        %v835 = vunpack.c.l.b16 %v519
        %v836 = vunpack.c.h.b16 %v519
        %v837 = vunpack.c.l.b16 %v520
        %v838 = vunpack.c.h.b16 %v520
        %v839 = vunpack.c.l.b16 %v521
        %v840 = vunpack.c.h.b16 %v521
        %v841 = vunpack.c.l.b16 %v522
        %v842 = vunpack.c.h.b16 %v522
        %v843 = vunpack.c.l.b16 %v523
        %v844 = vunpack.c.h.b16 %v523
        %v845 = vunpack.c.l.b16 %v524
        %v846 = vunpack.c.h.b16 %v524
        %v847 = vunpack.c.l.b16 %v525
        %v848 = vunpack.c.h.b16 %v525
        %v849 = vunpack.c.l.b16 %v526
        %v850 = vunpack.c.h.b16 %v526
        %v851 = vunpack.c.l.b16 %v527
        %v852 = vunpack.c.h.b16 %v527
        %v853 = vunpack.c.l.b16 %v528
        %v854 = vunpack.c.h.b16 %v528
        %v855 = vunpack.c.l.b16 %v529
        %v856 = vunpack.c.h.b16 %v529
        %v857 = vunpack.c.l.b16 %v530
        %v858 = vunpack.c.h.b16 %v530
        %v859 = vunpack.c.l.b16 %v531
        %v860 = vunpack.c.h.b16 %v531
        %v861 = vunpack.c.l.b16 %v532
        %v862 = vunpack.c.h.b16 %v532
        %v863 = vunpack.c.l.b16 %v533
        %v864 = vunpack.c.h.b16 %v533
        %v865 = vunpack.c.l.b16 %v534
        %v866 = vunpack.c.h.b16 %v534
        %v867 = vunpack.c.l.b16 %v535
        %v868 = vunpack.c.h.b16 %v535
        %v869 = vunpack.c.l.b16 %v536
        %v870 = vunpack.c.h.b16 %v536
        %v871 = vunpack.c.l.b16 %v537
        %v872 = vunpack.c.h.b16 %v537
        %v873 = vunpack.c.l.b16 %v538
        %v874 = vunpack.c.h.b16 %v538
        %v875 = vunpack.c.l.b16 %v539
        %v876 = vunpack.c.h.b16 %v539
        %v877 = vunpack.c.l.b16 %v540
        %v878 = vunpack.c.h.b16 %v540
        %v879 = vunpack.c.l.b16 %v541
        %v880 = vunpack.c.h.b16 %v541
        %v881 = vunpack.c.l.b16 %v542
        %v882 = vunpack.c.h.b16 %v542
        %v883 = vunpack.c.l.b16 %v543
        %v884 = vunpack.c.h.b16 %v543
        %v885 = vunpack.c.l.b16 %v544
        %v886 = vunpack.c.h.b16 %v544
        %v887 = vunpack.c.l.b16 %v545
        %v888 = vunpack.c.h.b16 %v545
        %v889 = vunpack.c.l.b16 %v546
        %v890 = vunpack.c.h.b16 %v546
        %v891 = vunpack.c.l.b16 %v547
        %v892 = vunpack.c.h.b16 %v547
        %v893 = vunpack.c.l.b16 %v548
        %v894 = vunpack.c.h.b16 %v548
        %v895 = vunpack.c.l.b16 %v549
        %v896 = vunpack.c.h.b16 %v549
        %v897 = vunpack.c.l.b16 %v550
        %v898 = vunpack.c.h.b16 %v550
        %v899 = vunpack.c.l.b16 %v551
        %v900 = vunpack.c.h.b16 %v551
        %v901 = vunpack.c.l.b16 %v552
        %v902 = vunpack.c.h.b16 %v552
        %v903 = vunpack.c.l.b16 %v553
        %v904 = vunpack.c.h.b16 %v553
        %v905 = vunpack.c.l.b16 %v554
        %v906 = vunpack.c.h.b16 %v554
        %v907 = vunpack.c.l.b16 %v555
        %v908 = vunpack.c.h.b16 %v555
        %v909 = vunpack.c.l.b16 %v556
        %v910 = vunpack.c.h.b16 %v556
        %v911 = vunpack.c.l.b16 %v557
        %v912 = vunpack.c.h.b16 %v557
        %v913 = vunpack.c.l.b16 %v558
        %v914 = vunpack.c.h.b16 %v558
        %v915 = vunpack.c.l.b16 %v559
        %v916 = vunpack.c.h.b16 %v559
        %v917 = vunpack.c.l.b16 %v560
        %v918 = vunpack.c.h.b16 %v560
        %v919 = vunpack.c.l.b16 %v561
        %v920 = vunpack.c.h.b16 %v561
        %v921 = vunpack.c.l.b16 %v562
        %v922 = vunpack.c.h.b16 %v562
        %v923 = vunpack.c.l.b16 %v563
        %v924 = vunpack.c.h.b16 %v563
        %v925 = vunpack.c.l.b16 %v564
        %v926 = vunpack.c.h.b16 %v564
        %v927 = vunpack.c.l.b16 %v565
        %v928 = vunpack.c.h.b16 %v565
        %v929 = vunpack.c.l.b16 %v566
        %v930 = vunpack.c.h.b16 %v566
        %v931 = vunpack.c.l.b16 %v567
        %v932 = vunpack.c.h.b16 %v567
        %v933 = vunpack.c.l.b16 %v568
        %v934 = vunpack.c.h.b16 %v568
        %v935 = vunpack.c.l.b16 %v569
        %v936 = vunpack.c.h.b16 %v569
        %v937 = vunpack.c.l.b16 %v570
        %v938 = vunpack.c.h.b16 %v570
        %v939 = vunpack.c.l.b16 %v571
        %v940 = vunpack.c.h.b16 %v571
        %v941 = vunpack.c.l.b16 %v572
        %v942 = vunpack.c.h.b16 %v572
        %v943 = vunpack.c.l.b16 %v573
        %v944 = vunpack.c.h.b16 %v573
        %v945 = vunpack.c.l.b16 %v574
        %v946 = vunpack.c.h.b16 %v574
        %v947 = vunpack.c.l.b16 %v575
        %v948 = vunpack.c.h.b16 %v575
        %v949 = vunpack.c.l.b16 %v576
        %v950 = vunpack.c.h.b16 %v576
        %v951 = vunpack.c.l.b16 %v577
        %v952 = vunpack.c.h.b16 %v577
        %v953 = vunpack.c.l.b16 %v578
        %v954 = vunpack.c.h.b16 %v578
        %v955 = vunpack.c.l.b16 %v579
        %v956 = vunpack.c.h.b16 %v579
        %v957 = vunpack.c.l.b16 %v580
        %v958 = vunpack.c.h.b16 %v580
        %v959 = vunpack.c.l.b16 %v581
        %v960 = vunpack.c.h.b16 %v581
        %v961 = vunpack.c.l.b16 %v582
        %v962 = vunpack.c.h.b16 %v582
        %v963 = vunpack.c.l.b16 %v583
        %v964 = vunpack.c.h.b16 %v583
        %v965 = vunpack.c.l.b16 %v584
        %v966 = vunpack.c.h.b16 %v584
        %v967 = vunpack.c.l.b16 %v585
        %v968 = vunpack.c.h.b16 %v585
        %v969 = vunpack.c.l.b16 %v586
        %v970 = vunpack.c.h.b16 %v586
        %v971 = vunpack.c.l.b16 %v587
        %v972 = vunpack.c.h.b16 %v587
        %v973 = vunpack.c.l.b16 %v588
        %v974 = vunpack.c.h.b16 %v588
        %v975 = vunpack.c.l.b16 %v589
        %v976 = vunpack.c.h.b16 %v589
        %v977 = vunpack.c.l.b16 %v590
        %v978 = vunpack.c.h.b16 %v590
        %v979 = vunpack.c.l.b16 %v591
        %v980 = vunpack.c.h.b16 %v591
        %v981 = vunpack.c.l.b16 %v592
        %v982 = vunpack.c.h.b16 %v592
        %v983 = vunpack.c.l.b16 %v593
        %v984 = vunpack.c.h.b16 %v593
        %v985 = vunpack.c.l.b16 %v594
        %v986 = vunpack.c.h.b16 %v594
        %v987 = vunpack.c.l.b16 %v595
        %v988 = vunpack.c.h.b16 %v595
        %v989 = vunpack.c.l.b16 %v596
        %v990 = vunpack.c.h.b16 %v596
        %v991 = vunpack.c.l.b16 %v597
        %v992 = vunpack.c.h.b16 %v597
        %v993 = vunpack.c.l.b16 %v598
        %v994 = vunpack.c.h.b16 %v598
        %v995 = vunpack.c.l.b16 %v599
        %v996 = vunpack.c.h.b16 %v599
        %v997 = vunpack.c.l.b16 %v600
        %v998 = vunpack.c.h.b16 %v600
        %v999 = vunpack.c.l.b16 %v601
        %v1000 = vunpack.c.h.b16 %v601
        %v1001 = vunpack.c.l.b16 %v602
        %v1002 = vunpack.c.h.b16 %v602
        %v1003 = vunpack.c.l.b16 %v603
        %v1004 = vunpack.c.h.b16 %v603
        %v1005 = vunpack.c.l.b16 %v604
        %v1006 = vunpack.c.h.b16 %v604
        %v1007 = vunpack.c.l.b16 %v605
        %v1008 = vunpack.c.h.b16 %v605
        %v1009 = vunpack.c.l.b16 %v606
        %v1010 = vunpack.c.h.b16 %v606
        %v1011 = vpack.c.b16 %v759, %v755
        %v1012 = vpack.c.b16 %v760, %v756
        %v1013 = vpack.c.b16 %v761, %v757
        %v1014 = vpack.c.b16 %v762, %v758
        %v1015 = vpack.c.b16 %v767, %v763
        %v1016 = vpack.c.b16 %v768, %v764
        %v1017 = vpack.c.b16 %v769, %v765
        %v1018 = vpack.c.b16 %v770, %v766
        %v1019 = vpack.c.b16 %v775, %v771
        %v1020 = vpack.c.b16 %v776, %v772
        %v1021 = vpack.c.b16 %v777, %v773
        %v1022 = vpack.c.b16 %v778, %v774
        %v1023 = vpack.c.b16 %v783, %v779
        %v1024 = vpack.c.b16 %v784, %v780
        %v1025 = vpack.c.b16 %v785, %v781
        %v1026 = vpack.c.b16 %v786, %v782
        %v1027 = vpack.c.b16 %v791, %v787
        %v1028 = vpack.c.b16 %v792, %v788
        %v1029 = vpack.c.b16 %v793, %v789
        %v1030 = vpack.c.b16 %v794, %v790
        %v1031 = vpack.c.b16 %v799, %v795
        %v1032 = vpack.c.b16 %v800, %v796
        %v1033 = vpack.c.b16 %v801, %v797
        %v1034 = vpack.c.b16 %v802, %v798
        %v1035 = vpack.c.b16 %v807, %v803
        %v1036 = vpack.c.b16 %v808, %v804
        %v1037 = vpack.c.b16 %v809, %v805
        %v1038 = vpack.c.b16 %v810, %v806
        %v1039 = vpack.c.b16 %v815, %v811
        %v1040 = vpack.c.b16 %v816, %v812
        %v1041 = vpack.c.b16 %v817, %v813
        %v1042 = vpack.c.b16 %v818, %v814
        %v1043 = vpack.c.b16 %v823, %v819
        %v1044 = vpack.c.b16 %v824, %v820
        %v1045 = vpack.c.b16 %v825, %v821
        %v1046 = vpack.c.b16 %v826, %v822
        %v1047 = vpack.c.b16 %v831, %v827
        %v1048 = vpack.c.b16 %v832, %v828
        %v1049 = vpack.c.b16 %v833, %v829
        %v1050 = vpack.c.b16 %v834, %v830
        %v1051 = vpack.c.b16 %v839, %v835
        %v1052 = vpack.c.b16 %v840, %v836
        %v1053 = vpack.c.b16 %v841, %v837
        %v1054 = vpack.c.b16 %v842, %v838
        %v1055 = vpack.c.b16 %v847, %v843
        %v1056 = vpack.c.b16 %v848, %v844
        %v1057 = vpack.c.b16 %v849, %v845
        %v1058 = vpack.c.b16 %v850, %v846
        %v1059 = vpack.c.b16 %v855, %v851
        %v1060 = vpack.c.b16 %v856, %v852
        %v1061 = vpack.c.b16 %v857, %v853
        %v1062 = vpack.c.b16 %v858, %v854
        %v1063 = vpack.c.b16 %v863, %v859
        %v1064 = vpack.c.b16 %v864, %v860
        %v1065 = vpack.c.b16 %v865, %v861
        %v1066 = vpack.c.b16 %v866, %v862
        %v1067 = vpack.c.b16 %v871, %v867
        %v1068 = vpack.c.b16 %v872, %v868
        %v1069 = vpack.c.b16 %v873, %v869
        %v1070 = vpack.c.b16 %v874, %v870
        %v1071 = vpack.c.b16 %v879, %v875
        %v1072 = vpack.c.b16 %v880, %v876
        %v1073 = vpack.c.b16 %v881, %v877
        %v1074 = vpack.c.b16 %v882, %v878
        %v1075 = vpack.c.b16 %v887, %v883
        %v1076 = vpack.c.b16 %v888, %v884
        %v1077 = vpack.c.b16 %v889, %v885
        %v1078 = vpack.c.b16 %v890, %v886
        %v1079 = vpack.c.b16 %v895, %v891
        %v1080 = vpack.c.b16 %v896, %v892
        %v1081 = vpack.c.b16 %v897, %v893
        %v1082 = vpack.c.b16 %v898, %v894
        %v1083 = vpack.c.b16 %v903, %v899
        %v1084 = vpack.c.b16 %v904, %v900
        %v1085 = vpack.c.b16 %v905, %v901
        %v1086 = vpack.c.b16 %v906, %v902
        %v1087 = vpack.c.b16 %v911, %v907
        %v1088 = vpack.c.b16 %v912, %v908
        %v1089 = vpack.c.b16 %v913, %v909
        %v1090 = vpack.c.b16 %v914, %v910
        %v1091 = vpack.c.b16 %v919, %v915
        %v1092 = vpack.c.b16 %v920, %v916
        %v1093 = vpack.c.b16 %v921, %v917
        %v1094 = vpack.c.b16 %v922, %v918
        %v1095 = vpack.c.b16 %v927, %v923
        %v1096 = vpack.c.b16 %v928, %v924
        %v1097 = vpack.c.b16 %v929, %v925
        %v1098 = vpack.c.b16 %v930, %v926
        %v1099 = vpack.c.b16 %v935, %v931
        %v1100 = vpack.c.b16 %v936, %v932
        %v1101 = vpack.c.b16 %v937, %v933
        %v1102 = vpack.c.b16 %v938, %v934
        %v1103 = vpack.c.b16 %v943, %v939
        %v1104 = vpack.c.b16 %v944, %v940
        %v1105 = vpack.c.b16 %v945, %v941
        %v1106 = vpack.c.b16 %v946, %v942
        %v1107 = vpack.c.b16 %v951, %v947
        %v1108 = vpack.c.b16 %v952, %v948
        %v1109 = vpack.c.b16 %v953, %v949
        %v1110 = vpack.c.b16 %v954, %v950
        %v1111 = vpack.c.b16 %v959, %v955
        %v1112 = vpack.c.b16 %v960, %v956
        %v1113 = vpack.c.b16 %v961, %v957
        %v1114 = vpack.c.b16 %v962, %v958
        %v1115 = vpack.c.b16 %v967, %v963
        %v1116 = vpack.c.b16 %v968, %v964
        %v1117 = vpack.c.b16 %v969, %v965
        %v1118 = vpack.c.b16 %v970, %v966
        %v1119 = vpack.c.b16 %v975, %v971
        %v1120 = vpack.c.b16 %v976, %v972
        %v1121 = vpack.c.b16 %v977, %v973
        %v1122 = vpack.c.b16 %v978, %v974
        %v1123 = vpack.c.b16 %v983, %v979
        %v1124 = vpack.c.b16 %v984, %v980
        %v1125 = vpack.c.b16 %v985, %v981
        %v1126 = vpack.c.b16 %v986, %v982
        %v1127 = vpack.c.b16 %v991, %v987
        %v1128 = vpack.c.b16 %v992, %v988
        %v1129 = vpack.c.b16 %v993, %v989
        %v1130 = vpack.c.b16 %v994, %v990
        %v1131 = vpack.c.b16 %v999, %v995
        %v1132 = vpack.c.b16 %v1000, %v996
        %v1133 = vpack.c.b16 %v1001, %v997
        %v1134 = vpack.c.b16 %v1002, %v998
        %v1135 = vpack.c.b16 %v1007, %v1003
        %v1136 = vpack.c.b16 %v1008, %v1004
        %v1137 = vpack.c.b16 %v1009, %v1005
        %v1138 = vpack.c.b16 %v1010, %v1006
        %1267 = vmatprep.subr.bf16.mxu0 %v1040
        %1268 = vmatpush1.bf16.msra.mxu0 %v1039
        %1269 = vmatprep.subr.bf16.mxu0 %v1036
        %1270 = vmatpush1.bf16.msra.mxu0 %v1035
        %1271 = vmatprep.subr.bf16.mxu0 %v1032
        %1272 = vmatpush1.bf16.msra.mxu0 %v1031
        %1273 = vmatprep.subr.bf16.mxu0 %v1028
        %1274 = vmatpush1.bf16.msra.mxu0 %v1027
        %1275 = vmatprep.subr.bf16.mxu0 %v1024
        %1276 = vmatpush1.bf16.msra.mxu0 %v1023
        %1277 = vmatprep.subr.bf16.mxu0 %v1020
        %1278 = vmatpush1.bf16.msra.mxu0 %v1019
        %1279 = vmatprep.subr.bf16.mxu0 %v1016
        %1280 = vmatpush1.bf16.msra.mxu0 %v1015
        %1281 = vmatprep.subr.bf16.mxu0 %v1012
        %1282 = vmatpush1.bf16.msra.mxu0 %v1011
        %1283 = vmatprep.subr.bf16.mxu0 %v1072
        %1284 = vmatpush2.bf16.msra.mxu0 %v1071
        %1285 = vmatprep.subr.bf16.mxu0 %v1068
        %1286 = vmatpush2.bf16.msra.mxu0 %v1067
        %1287 = vmatprep.subr.bf16.mxu0 %v1064
        %1288 = vmatpush2.bf16.msra.mxu0 %v1063
        %1289 = vmatprep.subr.bf16.mxu0 %v1060
        %1290 = vmatpush2.bf16.msra.mxu0 %v1059
        %1291 = vmatprep.subr.bf16.mxu0 %v1056
        %1292 = vmatpush2.bf16.msra.mxu0 %v1055
        %1293 = vmatprep.subr.bf16.mxu0 %v1052
        %1294 = vmatpush2.bf16.msra.mxu0 %v1051
        %1295 = vmatprep.subr.bf16.mxu0 %v1048
        %1296 = vmatpush2.bf16.msra.mxu0 %v1047
        %1297 = vmatprep.subr.bf16.mxu0 %v1044
        %1298 = vmatpush2.bf16.msra.mxu0 %v1043
        %1299 = vmatprep.mubr.bf16.mxu0 %v620
        %1300 = vmatmul.mubr.bf16.gmra.mxu0 %v619
        %v1301 = vpop.f32.mrf.mxu0
        %v1302 = vadd.f32 0.0, %v1301
        %v1303 = vpop.f32.mrf.mxu0
        %v1304 = vadd.f32 0.0, %v1303
        %v1305 = vpop.f32.mrf.mxu0
        %v1306 = vadd.f32 0.0, %v1305
        %v1307 = vpop.f32.mrf.mxu0
        %v1308 = vadd.f32 0.0, %v1307
        %1309 = vdwg.mxu0
        %1310 = vmatprep.subr.bf16.mxu0 %v1104
        %1311 = vmatpush1.bf16.msra.mxu0 %v1103
        %1312 = vmatprep.subr.bf16.mxu0 %v1100
        %1313 = vmatpush1.bf16.msra.mxu0 %v1099
        %1314 = vmatprep.subr.bf16.mxu0 %v1096
        %1315 = vmatpush1.bf16.msra.mxu0 %v1095
        %1316 = vmatprep.subr.bf16.mxu0 %v1092
        %1317 = vmatpush1.bf16.msra.mxu0 %v1091
        %1318 = vmatprep.subr.bf16.mxu0 %v1088
        %1319 = vmatpush1.bf16.msra.mxu0 %v1087
        %1320 = vmatprep.subr.bf16.mxu0 %v1084
        %1321 = vmatpush1.bf16.msra.mxu0 %v1083
        %1322 = vmatprep.subr.bf16.mxu0 %v1080
        %1323 = vmatpush1.bf16.msra.mxu0 %v1079
        %1324 = vmatprep.subr.bf16.mxu0 %v1076
        %1325 = vmatpush1.bf16.msra.mxu0 %v1075
        %1326 = vmatprep.subr.bf16.mxu0 %v1136
        %1327 = vmatpush2.bf16.msra.mxu0 %v1135
        %1328 = vmatprep.subr.bf16.mxu0 %v1132
        %1329 = vmatpush2.bf16.msra.mxu0 %v1131
        %1330 = vmatprep.subr.bf16.mxu0 %v1128
        %1331 = vmatpush2.bf16.msra.mxu0 %v1127
        %1332 = vmatprep.subr.bf16.mxu0 %v1124
        %1333 = vmatpush2.bf16.msra.mxu0 %v1123
        %1334 = vmatprep.subr.bf16.mxu0 %v1120
        %1335 = vmatpush2.bf16.msra.mxu0 %v1119
        %1336 = vmatprep.subr.bf16.mxu0 %v1116
        %1337 = vmatpush2.bf16.msra.mxu0 %v1115
        %1338 = vmatprep.subr.bf16.mxu0 %v1112
        %1339 = vmatpush2.bf16.msra.mxu0 %v1111
        %1340 = vmatprep.subr.bf16.mxu0 %v1108
        %1341 = vmatpush2.bf16.msra.mxu0 %v1107
        %1342 = vmatprep.mubr.bf16.mxu0 %v622
        %1343 = vmatmul.mubr.bf16.gmra.mxu0 %v621
        %v1344 = vpop.f32.mrf.mxu0
        %v1345 = vadd.f32 %v1302, %v1344
        %v1346 = vpop.f32.mrf.mxu0
        %v1347 = vadd.f32 %v1304, %v1346
        %v1348 = vpop.f32.mrf.mxu0
        %v1349 = vadd.f32 %v1306, %v1348
        %v1350 = vpop.f32.mrf.mxu0
        %v1351 = vadd.f32 %v1308, %v1350
        %1352 = vdwg.mxu0
        %1353 = vmatprep.subr.bf16.mxu0 %v1042
        %1354 = vmatpush1.bf16.msra.mxu0 %v1041
        %1355 = vmatprep.subr.bf16.mxu0 %v1038
        %1356 = vmatpush1.bf16.msra.mxu0 %v1037
        %1357 = vmatprep.subr.bf16.mxu0 %v1034
        %1358 = vmatpush1.bf16.msra.mxu0 %v1033
        %1359 = vmatprep.subr.bf16.mxu0 %v1030
        %1360 = vmatpush1.bf16.msra.mxu0 %v1029
        %1361 = vmatprep.subr.bf16.mxu0 %v1026
        %1362 = vmatpush1.bf16.msra.mxu0 %v1025
        %1363 = vmatprep.subr.bf16.mxu0 %v1022
        %1364 = vmatpush1.bf16.msra.mxu0 %v1021
        %1365 = vmatprep.subr.bf16.mxu0 %v1018
        %1366 = vmatpush1.bf16.msra.mxu0 %v1017
        %1367 = vmatprep.subr.bf16.mxu0 %v1014
        %1368 = vmatpush1.bf16.msra.mxu0 %v1013
        %1369 = vmatprep.subr.bf16.mxu0 %v1074
        %1370 = vmatpush2.bf16.msra.mxu0 %v1073
        %1371 = vmatprep.subr.bf16.mxu0 %v1070
        %1372 = vmatpush2.bf16.msra.mxu0 %v1069
        %1373 = vmatprep.subr.bf16.mxu0 %v1066
        %1374 = vmatpush2.bf16.msra.mxu0 %v1065
        %1375 = vmatprep.subr.bf16.mxu0 %v1062
        %1376 = vmatpush2.bf16.msra.mxu0 %v1061
        %1377 = vmatprep.subr.bf16.mxu0 %v1058
        %1378 = vmatpush2.bf16.msra.mxu0 %v1057
        %1379 = vmatprep.subr.bf16.mxu0 %v1054
        %1380 = vmatpush2.bf16.msra.mxu0 %v1053
        %1381 = vmatprep.subr.bf16.mxu0 %v1050
        %1382 = vmatpush2.bf16.msra.mxu0 %v1049
        %1383 = vmatprep.subr.bf16.mxu0 %v1046
        %1384 = vmatpush2.bf16.msra.mxu0 %v1045
        %1385 = vmatprep.mubr.bf16.mxu0 %v620
        %1386 = vmatmul.mubr.bf16.gmra.mxu0 %v619
        %v1387 = vpop.f32.mrf.mxu0
        %v1388 = vadd.f32 0.0, %v1387
        %v1389 = vpop.f32.mrf.mxu0
        %v1390 = vadd.f32 0.0, %v1389
        %v1391 = vpop.f32.mrf.mxu0
        %v1392 = vadd.f32 0.0, %v1391
        %v1393 = vpop.f32.mrf.mxu0
        %v1394 = vadd.f32 0.0, %v1393
        %1395 = vdwg.mxu0
        %1396 = vmatprep.subr.bf16.mxu0 %v1106
        %1397 = vmatpush1.bf16.msra.mxu0 %v1105
        %1398 = vmatprep.subr.bf16.mxu0 %v1102
        %1399 = vmatpush1.bf16.msra.mxu0 %v1101
        %1400 = vmatprep.subr.bf16.mxu0 %v1098
        %1401 = vmatpush1.bf16.msra.mxu0 %v1097
        %1402 = vmatprep.subr.bf16.mxu0 %v1094
        %1403 = vmatpush1.bf16.msra.mxu0 %v1093
        %1404 = vmatprep.subr.bf16.mxu0 %v1090
        %1405 = vmatpush1.bf16.msra.mxu0 %v1089
        %1406 = vmatprep.subr.bf16.mxu0 %v1086
        %1407 = vmatpush1.bf16.msra.mxu0 %v1085
        %1408 = vmatprep.subr.bf16.mxu0 %v1082
        %1409 = vmatpush1.bf16.msra.mxu0 %v1081
        %1410 = vmatprep.subr.bf16.mxu0 %v1078
        %1411 = vmatpush1.bf16.msra.mxu0 %v1077
        %1412 = vmatprep.subr.bf16.mxu0 %v1138
        %1413 = vmatpush2.bf16.msra.mxu0 %v1137
        %1414 = vmatprep.subr.bf16.mxu0 %v1134
        %1415 = vmatpush2.bf16.msra.mxu0 %v1133
        %1416 = vmatprep.subr.bf16.mxu0 %v1130
        %1417 = vmatpush2.bf16.msra.mxu0 %v1129
        %1418 = vmatprep.subr.bf16.mxu0 %v1126
        %1419 = vmatpush2.bf16.msra.mxu0 %v1125
        %1420 = vmatprep.subr.bf16.mxu0 %v1122
        %1421 = vmatpush2.bf16.msra.mxu0 %v1121
        %1422 = vmatprep.subr.bf16.mxu0 %v1118
        %1423 = vmatpush2.bf16.msra.mxu0 %v1117
        %1424 = vmatprep.subr.bf16.mxu0 %v1114
        %1425 = vmatpush2.bf16.msra.mxu0 %v1113
        %1426 = vmatprep.subr.bf16.mxu0 %v1110
        %1427 = vmatpush2.bf16.msra.mxu0 %v1109
        %1428 = vmatprep.mubr.bf16.mxu0 %v622
        %1429 = vmatmul.mubr.bf16.gmra.mxu0 %v621
        %v1430 = vpop.f32.mrf.mxu0
        %v1431 = vadd.f32 %v1388, %v1430
        %v1432 = vpop.f32.mrf.mxu0
        %v1433 = vadd.f32 %v1390, %v1432
        %v1434 = vpop.f32.mrf.mxu0
        %v1435 = vadd.f32 %v1392, %v1434
        %v1436 = vpop.f32.mrf.mxu0
        %v1437 = vadd.f32 %v1394, %v1436
        %1438 = vdwg.mxu0
        %v1439 = vadd.f32 %v467, %v1345
        %v1440 = vadd.f32 %v468, %v1347
        %v1441 = vadd.f32 %v469, %v1431
        %v1442 = vadd.f32 %v470, %v1433
        %v1443 = vadd.f32 %v471, %v1349
        %v1444 = vadd.f32 %v472, %v1351
        %v1445 = vadd.f32 %v473, %v1435
        %v1446 = vadd.f32 %v474, %v1437
        %1447 = vst [vmem:[#allocation2] sm:$0xff] %v1439
        %1448 = vst [vmem:[#allocation2 + $0x8] sm:$0xff] %v1440
        %1449 = vst [vmem:[#allocation2 + $0x10] sm:$0xff] %v1441
        %1450 = vst [vmem:[#allocation2 + $0x18] sm:$0xff] %v1442
        %1451 = vst [vmem:[#allocation2 + $0x20] sm:$0xff] %v1443
        %1452 = vst [vmem:[#allocation2 + $0x28] sm:$0xff] %v1444
        %1453 = vst [vmem:[#allocation2 + $0x30] sm:$0xff] %v1445
        %1454 = vst [vmem:[#allocation2 + $0x38] sm:$0xff] %v1446
        %p1455 = scmp.eq.s32.totalorder %s27, 3
        // Predicated region
        $region104: #{caption_features.1} parent=70 // pred_check
          %p1456 = pneg %p1455
        $region105: #{caption_features.1} parent=70 // pred_check_branch
          %1458 = sbr.rel (%p1456) target = $region107
        $region106: #{caption_features.1} parent=70 // pred_region
          %v1459 = vld [vmem:[%s0] sm:$0xff]
          %v1460 = vld [vmem:[%s0 + $0x8] sm:$0xff]
          %v1461 = vcvt.f32.s32.to.zero.pseudo %v1459
          %v1462 = vcvt.f32.s32.to.zero.pseudo %v1460
          %v1463 = vld [vmem:[#allocation12] sm:$0x1]
          %v1464 = vlaneseq
          %v1465 = vshrl.u32 %v1464, 7
          %v1466 = vsub.s32 0, %v1465
          %v1467 = vrot.slane %v1463, %v1466
          %v1468 = vadd.f32 %v1467, 0.0
          %v1469 = vld [vmem:[#allocation11] sm:$0x1]
          %1471 = vset.pattern.permute.xlu0 0
          %1472 = vperm.xlu0 %1471, %v1459
          %v1473 = vpop.permute.xlu0 %1472
          %1476 = vset.pattern.permute.xlu0 0
          %1477 = vperm.xlu0 %1476, %v1460
          %v1478 = vpop.permute.xlu0 %1477
          %v1480 = vlaneseq
          %v1481 = vshrl.u32 %v1480, 7
          %v1482 = vsub.s32 0, %v1481
          %v1483 = vrot.slane %v1469, %v1482
          %v1484 = vmul.f32 %v1473, %v1483
          %v1485 = vmul.f32 %v1478, %v1483
          %v1486 = vadd.f32 %v1468, %v1484
          %v1487 = vadd.f32 %v1468, %v1485
          %v1488 = vld [vmem:[#allocation11 + $0x1] sm:$0x1]
          %1489 = vset.pattern.permute.xlu0 1
          %1490 = vperm.xlu0 %1489, %v1459
          %v1491 = vpop.permute.xlu0 %1490
          %1493 = vset.pattern.permute.xlu0 1
          %1494 = vperm.xlu0 %1493, %v1460
          %v1495 = vpop.permute.xlu0 %1494
          %v1497 = vlaneseq
          %v1498 = vshrl.u32 %v1497, 7
          %v1499 = vsub.s32 0, %v1498
          %v1500 = vrot.slane %v1488, %v1499
          %v1501 = vmul.f32 %v1491, %v1500
          %v1502 = vmul.f32 %v1495, %v1500
          %v1503 = vadd.f32 %v1486, %v1501
          %v1504 = vadd.f32 %v1487, %v1502
          %v1505 = vld [vmem:[#allocation11 + $0x2] sm:$0x1]
          %1506 = vset.pattern.permute.xlu0 2
          %1507 = vperm.xlu0 %1506, %v1459
          %v1508 = vpop.permute.xlu0 %1507
          %1510 = vset.pattern.permute.xlu0 2
          %1511 = vperm.xlu0 %1510, %v1460
          %v1512 = vpop.permute.xlu0 %1511
          %v1514 = vlaneseq
          %v1515 = vshrl.u32 %v1514, 7
          %v1516 = vsub.s32 0, %v1515
          %v1517 = vrot.slane %v1505, %v1516
          %v1518 = vmul.f32 %v1508, %v1517
          %v1519 = vmul.f32 %v1512, %v1517
          %v1520 = vadd.f32 %v1503, %v1518
          %v1521 = vadd.f32 %v1504, %v1519
          %v1522 = vld [vmem:[#allocation11 + $0x3] sm:$0x1]
          %1523 = vset.pattern.permute.xlu0 3
          %1524 = vperm.xlu0 %1523, %v1459
          %v1525 = vpop.permute.xlu0 %1524
          %1527 = vset.pattern.permute.xlu0 3
          %1528 = vperm.xlu0 %1527, %v1460
          %v1529 = vpop.permute.xlu0 %1528
          %v1531 = vlaneseq
          %v1532 = vshrl.u32 %v1531, 7
          %v1533 = vsub.s32 0, %v1532
          %v1534 = vrot.slane %v1522, %v1533
          %v1535 = vmul.f32 %v1525, %v1534
          %v1536 = vmul.f32 %v1529, %v1534
          %v1537 = vadd.f32 %v1520, %v1535
          %v1538 = vadd.f32 %v1521, %v1536
          %v1539 = vld [vmem:[#allocation11 + $0x4] sm:$0x1]
          %1540 = vset.pattern.permute.xlu0 4
          %1541 = vperm.xlu0 %1540, %v1459
          %v1542 = vpop.permute.xlu0 %1541
          %1544 = vset.pattern.permute.xlu0 4
          %1545 = vperm.xlu0 %1544, %v1460
          %v1546 = vpop.permute.xlu0 %1545
          %v1548 = vlaneseq
          %v1549 = vshrl.u32 %v1548, 7
          %v1550 = vsub.s32 0, %v1549
          %v1551 = vrot.slane %v1539, %v1550
          %v1552 = vmul.f32 %v1542, %v1551
          %v1553 = vmul.f32 %v1546, %v1551
          %v1554 = vadd.f32 %v1537, %v1552
          %v1555 = vadd.f32 %v1538, %v1553
          %v1556 = vld [vmem:[#allocation11 + $0x5] sm:$0x1]
          %1557 = vset.pattern.permute.xlu0 5
          %1558 = vperm.xlu0 %1557, %v1459
          %v1559 = vpop.permute.xlu0 %1558
          %1561 = vset.pattern.permute.xlu0 5
          %1562 = vperm.xlu0 %1561, %v1460
          %v1563 = vpop.permute.xlu0 %1562
          %v1565 = vlaneseq
          %v1566 = vshrl.u32 %v1565, 7
          %v1567 = vsub.s32 0, %v1566
          %v1568 = vrot.slane %v1556, %v1567
          %v1569 = vmul.f32 %v1559, %v1568
          %v1570 = vmul.f32 %v1563, %v1568
          %v1571 = vadd.f32 %v1554, %v1569
          %v1572 = vadd.f32 %v1555, %v1570
          %v1573 = vld [vmem:[#allocation11 + $0x6] sm:$0x1]
          %1574 = vset.pattern.permute.xlu0 6
          %1575 = vperm.xlu0 %1574, %v1459
          %v1576 = vpop.permute.xlu0 %1575
          %1578 = vset.pattern.permute.xlu0 6
          %1579 = vperm.xlu0 %1578, %v1460
          %v1580 = vpop.permute.xlu0 %1579
          %v1582 = vlaneseq
          %v1583 = vshrl.u32 %v1582, 7
          %v1584 = vsub.s32 0, %v1583
          %v1585 = vrot.slane %v1573, %v1584
          %v1586 = vmul.f32 %v1576, %v1585
          %v1587 = vmul.f32 %v1580, %v1585
          %v1588 = vadd.f32 %v1571, %v1586
          %v1589 = vadd.f32 %v1572, %v1587
          %v1590 = vld [vmem:[#allocation11 + $0x7] sm:$0x1]
          %1591 = vset.pattern.permute.xlu0 7
          %1592 = vperm.xlu0 %1591, %v1459
          %v1593 = vpop.permute.xlu0 %1592
          %1595 = vset.pattern.permute.xlu0 7
          %1596 = vperm.xlu0 %1595, %v1460
          %v1597 = vpop.permute.xlu0 %1596
          %v1599 = vlaneseq
          %v1600 = vshrl.u32 %v1599, 7
          %v1601 = vsub.s32 0, %v1600
          %v1602 = vrot.slane %v1590, %v1601
          %v1603 = vmul.f32 %v1593, %v1602
          %v1604 = vmul.f32 %v1597, %v1602
          %v1605 = vadd.f32 %v1588, %v1603
          %v1606 = vadd.f32 %v1589, %v1604
          %v1607 = vld [vmem:[#allocation11 + $0x8] sm:$0x1]
          %1608 = vset.pattern.permute.xlu0 8
          %1609 = vperm.xlu0 %1608, %v1459
          %v1610 = vpop.permute.xlu0 %1609
          %1612 = vset.pattern.permute.xlu0 8
          %1613 = vperm.xlu0 %1612, %v1460
          %v1614 = vpop.permute.xlu0 %1613
          %v1616 = vlaneseq
          %v1617 = vshrl.u32 %v1616, 7
          %v1618 = vsub.s32 0, %v1617
          %v1619 = vrot.slane %v1607, %v1618
          %v1620 = vmul.f32 %v1610, %v1619
          %v1621 = vmul.f32 %v1614, %v1619
          %v1622 = vadd.f32 %v1605, %v1620
          %v1623 = vadd.f32 %v1606, %v1621
          %v1624 = vld [vmem:[#allocation11 + $0x9] sm:$0x1]
          %1625 = vset.pattern.permute.xlu0 9
          %1626 = vperm.xlu0 %1625, %v1459
          %v1627 = vpop.permute.xlu0 %1626
          %1629 = vset.pattern.permute.xlu0 9
          %1630 = vperm.xlu0 %1629, %v1460
          %v1631 = vpop.permute.xlu0 %1630
          %v1633 = vlaneseq
          %v1634 = vshrl.u32 %v1633, 7
          %v1635 = vsub.s32 0, %v1634
          %v1636 = vrot.slane %v1624, %v1635
          %v1637 = vmul.f32 %v1627, %v1636
          %v1638 = vmul.f32 %v1631, %v1636
          %v1639 = vadd.f32 %v1622, %v1637
          %v1640 = vadd.f32 %v1623, %v1638
          %v1641 = vld [vmem:[#allocation11 + $0xa] sm:$0x1]
          %1642 = vset.pattern.permute.xlu0 10
          %1643 = vperm.xlu0 %1642, %v1459
          %v1644 = vpop.permute.xlu0 %1643
          %1646 = vset.pattern.permute.xlu0 10
          %1647 = vperm.xlu0 %1646, %v1460
          %v1648 = vpop.permute.xlu0 %1647
          %v1650 = vlaneseq
          %v1651 = vshrl.u32 %v1650, 7
          %v1652 = vsub.s32 0, %v1651
          %v1653 = vrot.slane %v1641, %v1652
          %v1654 = vmul.f32 %v1644, %v1653
          %v1655 = vmul.f32 %v1648, %v1653
          %v1656 = vadd.f32 %v1639, %v1654
          %v1657 = vadd.f32 %v1640, %v1655
          %v1658 = vld [vmem:[#allocation11 + $0xb] sm:$0x1]
          %1659 = vset.pattern.permute.xlu0 11
          %1660 = vperm.xlu0 %1659, %v1459
          %v1661 = vpop.permute.xlu0 %1660
          %1663 = vset.pattern.permute.xlu0 11
          %1664 = vperm.xlu0 %1663, %v1460
          %v1665 = vpop.permute.xlu0 %1664
          %v1667 = vlaneseq
          %v1668 = vshrl.u32 %v1667, 7
          %v1669 = vsub.s32 0, %v1668
          %v1670 = vrot.slane %v1658, %v1669
          %v1671 = vmul.f32 %v1661, %v1670
          %v1672 = vmul.f32 %v1665, %v1670
          %v1673 = vadd.f32 %v1656, %v1671
          %v1674 = vadd.f32 %v1657, %v1672
          %v1675 = vld [vmem:[#allocation11 + $0xc] sm:$0x1]
          %1676 = vset.pattern.permute.xlu0 12
          %1677 = vperm.xlu0 %1676, %v1459
          %v1678 = vpop.permute.xlu0 %1677
          %1680 = vset.pattern.permute.xlu0 12
          %1681 = vperm.xlu0 %1680, %v1460
          %v1682 = vpop.permute.xlu0 %1681
          %v1684 = vlaneseq
          %v1685 = vshrl.u32 %v1684, 7
          %v1686 = vsub.s32 0, %v1685
          %v1687 = vrot.slane %v1675, %v1686
          %v1688 = vmul.f32 %v1678, %v1687
          %v1689 = vmul.f32 %v1682, %v1687
          %v1690 = vadd.f32 %v1673, %v1688
          %v1691 = vadd.f32 %v1674, %v1689
          %v1692 = vld [vmem:[#allocation11 + $0xd] sm:$0x1]
          %1693 = vset.pattern.permute.xlu0 13
          %1694 = vperm.xlu0 %1693, %v1459
          %v1695 = vpop.permute.xlu0 %1694
          %1697 = vset.pattern.permute.xlu0 13
          %1698 = vperm.xlu0 %1697, %v1460
          %v1699 = vpop.permute.xlu0 %1698
          %v1701 = vlaneseq
          %v1702 = vshrl.u32 %v1701, 7
          %v1703 = vsub.s32 0, %v1702
          %v1704 = vrot.slane %v1692, %v1703
          %v1705 = vmul.f32 %v1695, %v1704
          %v1706 = vmul.f32 %v1699, %v1704
          %v1707 = vadd.f32 %v1690, %v1705
          %v1708 = vadd.f32 %v1691, %v1706
          %v1709 = vld [vmem:[#allocation11 + $0xe] sm:$0x1]
          %1710 = vset.pattern.permute.xlu0 14
          %1711 = vperm.xlu0 %1710, %v1459
          %v1712 = vpop.permute.xlu0 %1711
          %1714 = vset.pattern.permute.xlu0 14
          %1715 = vperm.xlu0 %1714, %v1460
          %v1716 = vpop.permute.xlu0 %1715
          %v1718 = vlaneseq
          %v1719 = vshrl.u32 %v1718, 7
          %v1720 = vsub.s32 0, %v1719
          %v1721 = vrot.slane %v1709, %v1720
          %v1722 = vmul.f32 %v1712, %v1721
          %v1723 = vmul.f32 %v1716, %v1721
          %v1724 = vadd.f32 %v1707, %v1722
          %v1725 = vadd.f32 %v1708, %v1723
          %v1726 = vld [vmem:[#allocation11 + $0xf] sm:$0x1]
          %1727 = vset.pattern.permute.xlu0 15
          %1728 = vperm.xlu0 %1727, %v1459
          %v1729 = vpop.permute.xlu0 %1728
          %1731 = vset.pattern.permute.xlu0 15
          %1732 = vperm.xlu0 %1731, %v1460
          %v1733 = vpop.permute.xlu0 %1732
          %v1735 = vlaneseq
          %v1736 = vshrl.u32 %v1735, 7
          %v1737 = vsub.s32 0, %v1736
          %v1738 = vrot.slane %v1726, %v1737
          %v1739 = vmul.f32 %v1729, %v1738
          %v1740 = vmul.f32 %v1733, %v1738
          %v1741 = vadd.f32 %v1724, %v1739
          %v1742 = vadd.f32 %v1725, %v1740
          %v1743 = vld [vmem:[#allocation12 + $0x1] sm:$0x1]
          %v1744 = vld [vmem:[#allocation12 + $0x2] sm:$0x1]
          %vm1745 = vcmask 261120
          %v1746 = vsel %vm1745, %v1741, 0.0
          %1747 = vadd.xlane.f32.xlu0 %v1746
          %v1748 = vpop.xlane.xlu0 %1747
          %v1749 = vsel %vm1745, %v1742, 0.0
          %1750 = vadd.xlane.f32.xlu0 %v1749
          %v1751 = vpop.xlane.xlu0 %1750
          %v1752 = vrcp.pop 32.0
          %v1753 = vmul.f32 %v1748, %v1752
          %v1754 = vmul.f32 %v1751, %v1752
          %v1755 = vsub.f32 %v1741, %v1753
          %v1756 = vsub.f32 %v1742, %v1754
          %v1757 = vmul.f32 %v1755, %v1755
          %v1758 = vmul.f32 %v1756, %v1756
          %v1759 = vsel %vm1745, %v1757, 0.0
          %1760 = vadd.xlane.f32.xlu0 %v1759
          %v1761 = vpop.xlane.xlu0 %1760
          %v1762 = vsel %vm1745, %v1758, 0.0
          %1763 = vadd.xlane.f32.xlu0 %v1762
          %v1764 = vpop.xlane.xlu0 %1763
          %v1765 = vmul.f32 %v1761, %v1752
          %v1766 = vmul.f32 %v1764, %v1752
          %v1767 = vadd.f32 %v1765, 1e-05
          %v1768 = vadd.f32 %v1766, 1e-05
          %v1769 = vrsqrt.pop %v1767
          %v1770 = vrsqrt.pop %v1768
          %v1771 = vmul.f32 %v1755, %v1769
          %v1772 = vmul.f32 %v1756, %v1770
          %v1773 = vlaneseq
          %v1774 = vshrl.u32 %v1773, 7
          %v1775 = vsub.s32 0, %v1774
          %v1776 = vrot.slane %v1743, %v1775
          %v1777 = vmul.f32 %v1771, %v1776
          %v1778 = vmul.f32 %v1772, %v1776
          %v1779 = vlaneseq
          %v1780 = vshrl.u32 %v1779, 7
          %v1781 = vsub.s32 0, %v1780
          %v1782 = vrot.slane %v1744, %v1781
          %v1783 = vadd.f32 %v1777, %v1782
          %v1784 = vadd.f32 %v1778, %v1782
          %1787 = vrot.lane.b32.xlu0 %v1741, 96
          %v1788 = vpop.permute.xlu0 %1787
          %1789 = vrot.lane.b32.xlu0 %v1742, 96
          %v1790 = vpop.permute.xlu0 %1789
          %v1793 = vsel %vm1745, %v1788, 0.0
          %1794 = vadd.xlane.f32.xlu0 %v1793
          %v1795 = vpop.xlane.xlu0 %1794
          %v1796 = vsel %vm1745, %v1790, 0.0
          %1797 = vadd.xlane.f32.xlu0 %v1796
          %v1798 = vpop.xlane.xlu0 %1797
          %v1799 = vmul.f32 %v1795, %v1752
          %v1800 = vmul.f32 %v1798, %v1752
          %v1801 = vsub.f32 %v1741, %v1799
          %v1802 = vsub.f32 %v1742, %v1800
          %v1803 = vmul.f32 %v1801, %v1801
          %v1804 = vmul.f32 %v1802, %v1802
          %1807 = vrot.lane.b32.xlu0 %v1803, 96
          %v1808 = vpop.permute.xlu0 %1807
          %1809 = vrot.lane.b32.xlu0 %v1804, 96
          %v1810 = vpop.permute.xlu0 %1809
          %v1813 = vsel %vm1745, %v1808, 0.0
          %1814 = vadd.xlane.f32.xlu0 %v1813
          %v1815 = vpop.xlane.xlu0 %1814
          %v1816 = vsel %vm1745, %v1810, 0.0
          %1817 = vadd.xlane.f32.xlu0 %v1816
          %v1818 = vpop.xlane.xlu0 %1817
          %v1819 = vmul.f32 %v1815, %v1752
          %v1820 = vmul.f32 %v1818, %v1752
          %v1821 = vadd.f32 %v1819, 1e-05
          %v1822 = vadd.f32 %v1820, 1e-05
          %v1823 = vrsqrt.pop %v1821
          %v1824 = vrsqrt.pop %v1822
          %v1825 = vmul.f32 %v1801, %v1823
          %v1826 = vmul.f32 %v1802, %v1824
          %v1827 = vmul.f32 %v1825, %v1776
          %v1828 = vmul.f32 %v1826, %v1776
          %v1829 = vadd.f32 %v1827, %v1782
          %v1830 = vadd.f32 %v1828, %v1782
          %1831 = vrot.lane.b32.xlu0 %v1741, 64
          %v1832 = vpop.permute.xlu0 %1831
          %1833 = vrot.lane.b32.xlu0 %v1742, 64
          %v1834 = vpop.permute.xlu0 %1833
          %v1837 = vsel %vm1745, %v1832, 0.0
          %1838 = vadd.xlane.f32.xlu0 %v1837
          %v1839 = vpop.xlane.xlu0 %1838
          %v1840 = vsel %vm1745, %v1834, 0.0
          %1841 = vadd.xlane.f32.xlu0 %v1840
          %v1842 = vpop.xlane.xlu0 %1841
          %v1843 = vmul.f32 %v1839, %v1752
          %v1844 = vmul.f32 %v1842, %v1752
          %v1845 = vsub.f32 %v1741, %v1843
          %v1846 = vsub.f32 %v1742, %v1844
          %v1847 = vmul.f32 %v1845, %v1845
          %v1848 = vmul.f32 %v1846, %v1846
          %1851 = vrot.lane.b32.xlu0 %v1847, 64
          %v1852 = vpop.permute.xlu0 %1851
          %1853 = vrot.lane.b32.xlu0 %v1848, 64
          %v1854 = vpop.permute.xlu0 %1853
          %v1857 = vsel %vm1745, %v1852, 0.0
          %1858 = vadd.xlane.f32.xlu0 %v1857
          %v1859 = vpop.xlane.xlu0 %1858
          %v1860 = vsel %vm1745, %v1854, 0.0
          %1861 = vadd.xlane.f32.xlu0 %v1860
          %v1862 = vpop.xlane.xlu0 %1861
          %v1863 = vmul.f32 %v1859, %v1752
          %v1864 = vmul.f32 %v1862, %v1752
          %v1865 = vadd.f32 %v1863, 1e-05
          %v1866 = vadd.f32 %v1864, 1e-05
          %v1867 = vrsqrt.pop %v1865
          %v1868 = vrsqrt.pop %v1866
          %v1869 = vmul.f32 %v1845, %v1867
          %v1870 = vmul.f32 %v1846, %v1868
          %v1871 = vmul.f32 %v1869, %v1776
          %v1872 = vmul.f32 %v1870, %v1776
          %v1873 = vadd.f32 %v1871, %v1782
          %v1874 = vadd.f32 %v1872, %v1782
          %v1875 = vld [vmem:[#allocation2] sm:$0xff]
          %v1876 = vld [vmem:[#allocation2 + $0x8] sm:$0xff]
          %v1877 = vld [vmem:[#allocation2 + $0x10] sm:$0xff]
          %v1878 = vld [vmem:[#allocation2 + $0x18] sm:$0xff]
          %v1879 = vld [vmem:[#allocation2 + $0x20] sm:$0xff]
          %v1880 = vld [vmem:[#allocation2 + $0x28] sm:$0xff]
          %v1881 = vld [vmem:[#allocation2 + $0x30] sm:$0xff]
          %v1882 = vld [vmem:[#allocation2 + $0x38] sm:$0xff]
          %v1883 = vld [vmem:[#allocation9] ss:$4 sm:$0xf]
          %v1885 = vlaneseq
          %v1886 = vshrl.u32 %v1885, 7
          %v1887 = vsub.s32 0, %v1886
          %v1888 = vrot.slane %v1883, %v1887
          %v1889 = vlaneseq
          %v1890 = vshrl.u32 %v1889, 7
          %v1891 = vsub.s32 1, %v1890
          %v1892 = vrot.slane %v1883, %v1891
          %v1893 = vlaneseq
          %v1894 = vshrl.u32 %v1893, 7
          %v1895 = vsub.s32 2, %v1894
          %v1896 = vrot.slane %v1883, %v1895
          %v1897 = vlaneseq
          %v1898 = vshrl.u32 %v1897, 7
          %v1899 = vsub.s32 3, %v1898
          %v1900 = vrot.slane %v1883, %v1899
          %v1905 = vadd.f32 %v1875, %v1888
          %v1906 = vadd.f32 %v1876, %v1892
          %v1907 = vadd.f32 %v1877, %v1896
          %v1908 = vadd.f32 %v1878, %v1900
          %v1909 = vadd.f32 %v1879, %v1888
          %v1910 = vadd.f32 %v1880, %v1892
          %v1911 = vadd.f32 %v1881, %v1896
          %v1912 = vadd.f32 %v1882, %v1900
          %v1913 = vmax.f32 %v1905, 0.0
          %v1914 = vmax.f32 %v1906, 0.0
          %v1915 = vmax.f32 %v1907, 0.0
          %v1916 = vmax.f32 %v1908, 0.0
          %v1917 = vmax.f32 %v1909, 0.0
          %v1918 = vmax.f32 %v1910, 0.0
          %v1919 = vmax.f32 %v1911, 0.0
          %v1920 = vmax.f32 %v1912, 0.0
          %s1921 = scalar_lea.vmem [#allocation9], 1
          %v1922 = vld [vmem:[%s1921] ss:$4 sm:$0xf]
          %s1923 = scalar_lea.vmem [#allocation9], 2
          %v1924 = vld [vmem:[%s1923] ss:$4 sm:$0xf]
          %v1925 = vadd.f32 %v1913, %v1914
          %v1926 = vadd.f32 %v1925, %v1915
          %v1927 = vadd.f32 %v1926, %v1916
          %1928 = vadd.xlane.f32.xlu0 %v1927
          %v1929 = vpop.xlane.xlu0 %1928
          %v1930 = vadd.f32 %v1917, %v1918
          %v1931 = vadd.f32 %v1930, %v1919
          %v1932 = vadd.f32 %v1931, %v1920
          %1933 = vadd.xlane.f32.xlu0 %v1932
          %v1934 = vpop.xlane.xlu0 %1933
          %v1935 = vrcp.pop 512.0
          %v1936 = vmul.f32 %v1929, %v1935
          %v1937 = vmul.f32 %v1934, %v1935
          %v1938 = vsub.f32 %v1913, %v1936
          %v1939 = vsub.f32 %v1914, %v1936
          %v1940 = vsub.f32 %v1915, %v1936
          %v1941 = vsub.f32 %v1916, %v1936
          %v1942 = vsub.f32 %v1917, %v1937
          %v1943 = vsub.f32 %v1918, %v1937
          %v1944 = vsub.f32 %v1919, %v1937
          %v1945 = vsub.f32 %v1920, %v1937
          %v1946 = vmul.f32 %v1938, %v1938
          %v1947 = vmul.f32 %v1939, %v1939
          %v1948 = vmul.f32 %v1940, %v1940
          %v1949 = vmul.f32 %v1941, %v1941
          %v1950 = vmul.f32 %v1942, %v1942
          %v1951 = vmul.f32 %v1943, %v1943
          %v1952 = vmul.f32 %v1944, %v1944
          %v1953 = vmul.f32 %v1945, %v1945
          %v1954 = vadd.f32 %v1946, %v1947
          %v1955 = vadd.f32 %v1954, %v1948
          %v1956 = vadd.f32 %v1955, %v1949
          %1957 = vadd.xlane.f32.xlu0 %v1956
          %v1958 = vpop.xlane.xlu0 %1957
          %v1959 = vadd.f32 %v1950, %v1951
          %v1960 = vadd.f32 %v1959, %v1952
          %v1961 = vadd.f32 %v1960, %v1953
          %1962 = vadd.xlane.f32.xlu0 %v1961
          %v1963 = vpop.xlane.xlu0 %1962
          %v1964 = vmul.f32 %v1958, %v1935
          %v1965 = vmul.f32 %v1963, %v1935
          %v1966 = vadd.f32 %v1964, 1e-05
          %v1967 = vadd.f32 %v1965, 1e-05
          %v1968 = vrsqrt.pop %v1966
          %v1969 = vrsqrt.pop %v1967
          %v1970 = vmul.f32 %v1938, %v1968
          %v1971 = vmul.f32 %v1939, %v1968
          %v1972 = vmul.f32 %v1940, %v1968
          %v1973 = vmul.f32 %v1941, %v1968
          %v1974 = vmul.f32 %v1942, %v1969
          %v1975 = vmul.f32 %v1943, %v1969
          %v1976 = vmul.f32 %v1944, %v1969
          %v1977 = vmul.f32 %v1945, %v1969
          %v1979 = vlaneseq
          %v1980 = vshrl.u32 %v1979, 7
          %v1981 = vsub.s32 0, %v1980
          %v1982 = vrot.slane %v1922, %v1981
          %v1983 = vlaneseq
          %v1984 = vshrl.u32 %v1983, 7
          %v1985 = vsub.s32 1, %v1984
          %v1986 = vrot.slane %v1922, %v1985
          %v1987 = vlaneseq
          %v1988 = vshrl.u32 %v1987, 7
          %v1989 = vsub.s32 2, %v1988
          %v1990 = vrot.slane %v1922, %v1989
          %v1991 = vlaneseq
          %v1992 = vshrl.u32 %v1991, 7
          %v1993 = vsub.s32 3, %v1992
          %v1994 = vrot.slane %v1922, %v1993
          %v1999 = vmul.f32 %v1970, %v1982
          %v2000 = vmul.f32 %v1971, %v1986
          %v2001 = vmul.f32 %v1972, %v1990
          %v2002 = vmul.f32 %v1973, %v1994
          %v2003 = vmul.f32 %v1974, %v1982
          %v2004 = vmul.f32 %v1975, %v1986
          %v2005 = vmul.f32 %v1976, %v1990
          %v2006 = vmul.f32 %v1977, %v1994
          %v2008 = vlaneseq
          %v2009 = vshrl.u32 %v2008, 7
          %v2010 = vsub.s32 0, %v2009
          %v2011 = vrot.slane %v1924, %v2010
          %v2012 = vlaneseq
          %v2013 = vshrl.u32 %v2012, 7
          %v2014 = vsub.s32 1, %v2013
          %v2015 = vrot.slane %v1924, %v2014
          %v2016 = vlaneseq
          %v2017 = vshrl.u32 %v2016, 7
          %v2018 = vsub.s32 2, %v2017
          %v2019 = vrot.slane %v1924, %v2018
          %v2020 = vlaneseq
          %v2021 = vshrl.u32 %v2020, 7
          %v2022 = vsub.s32 3, %v2021
          %v2023 = vrot.slane %v1924, %v2022
          %v2028 = vadd.f32 %v1999, %v2011
          %v2029 = vadd.f32 %v2000, %v2015
          %v2030 = vadd.f32 %v2001, %v2019
          %v2031 = vadd.f32 %v2002, %v2023
          %v2032 = vadd.f32 %v2003, %v2011
          %v2033 = vadd.f32 %v2004, %v2015
          %v2034 = vadd.f32 %v2005, %v2019
          %v2035 = vadd.f32 %v2006, %v2023
          %v2036 = vpack.c.bf16 %v2032, %v2028
          %v2037 = vpack.c.bf16 %v2033, %v2029
          %v2038 = vpack.c.bf16 %v2034, %v2030
          %v2039 = vpack.c.bf16 %v2035, %v2031
          %v2040 = vld [vmem:[#allocation8] sm:$0xf]
          %v2041 = vld [vmem:[#allocation8 + $0x4] sm:$0xf]
          %v2042 = vld [vmem:[#allocation8 + $0x8] sm:$0xf]
          %v2043 = vld [vmem:[#allocation8 + $0xc] sm:$0xf]
          %v2044 = vld [vmem:[#allocation8 + $0x10] sm:$0xf]
          %v2045 = vld [vmem:[#allocation8 + $0x14] sm:$0xf]
          %v2046 = vld [vmem:[#allocation8 + $0x18] sm:$0xf]
          %v2047 = vld [vmem:[#allocation8 + $0x1c] sm:$0xf]
          %v2048 = vld [vmem:[#allocation8 + $0x20] sm:$0xf]
          %v2049 = vld [vmem:[#allocation8 + $0x24] sm:$0xf]
          %v2050 = vld [vmem:[#allocation8 + $0x28] sm:$0xf]
          %v2051 = vld [vmem:[#allocation8 + $0x2c] sm:$0xf]
          %v2052 = vld [vmem:[#allocation8 + $0x30] sm:$0xf]
          %v2053 = vld [vmem:[#allocation8 + $0x34] sm:$0xf]
          %v2054 = vld [vmem:[#allocation8 + $0x38] sm:$0xf]
          %v2055 = vld [vmem:[#allocation8 + $0x3c] sm:$0xf]
          %v2056 = vld [vmem:[#allocation8 + $0x40] sm:$0xf]
          %v2057 = vld [vmem:[#allocation8 + $0x44] sm:$0xf]
          %v2058 = vld [vmem:[#allocation8 + $0x48] sm:$0xf]
          %v2059 = vld [vmem:[#allocation8 + $0x4c] sm:$0xf]
          %v2060 = vld [vmem:[#allocation8 + $0x50] sm:$0xf]
          %v2061 = vld [vmem:[#allocation8 + $0x54] sm:$0xf]
          %v2062 = vld [vmem:[#allocation8 + $0x58] sm:$0xf]
          %v2063 = vld [vmem:[#allocation8 + $0x5c] sm:$0xf]
          %v2064 = vld [vmem:[#allocation8 + $0x60] sm:$0xf]
          %v2065 = vld [vmem:[#allocation8 + $0x64] sm:$0xf]
          %v2066 = vld [vmem:[#allocation8 + $0x68] sm:$0xf]
          %v2067 = vld [vmem:[#allocation8 + $0x6c] sm:$0xf]
          %v2068 = vld [vmem:[#allocation8 + $0x70] sm:$0xf]
          %v2069 = vld [vmem:[#allocation8 + $0x74] sm:$0xf]
          %v2070 = vld [vmem:[#allocation8 + $0x78] sm:$0xf]
          %v2071 = vld [vmem:[#allocation8 + $0x7c] sm:$0xf]
          %v2072 = vld [vmem:[#allocation8 + $0x80] sm:$0xf]
          %v2073 = vld [vmem:[#allocation8 + $0x84] sm:$0xf]
          %v2074 = vld [vmem:[#allocation8 + $0x88] sm:$0xf]
          %v2075 = vld [vmem:[#allocation8 + $0x8c] sm:$0xf]
          %v2076 = vld [vmem:[#allocation8 + $0x90] sm:$0xf]
          %v2077 = vld [vmem:[#allocation8 + $0x94] sm:$0xf]
          %v2078 = vld [vmem:[#allocation8 + $0x98] sm:$0xf]
          %v2079 = vld [vmem:[#allocation8 + $0x9c] sm:$0xf]
          %v2080 = vld [vmem:[#allocation8 + $0xa0] sm:$0xf]
          %v2081 = vld [vmem:[#allocation8 + $0xa4] sm:$0xf]
          %v2082 = vld [vmem:[#allocation8 + $0xa8] sm:$0xf]
          %v2083 = vld [vmem:[#allocation8 + $0xac] sm:$0xf]
          %v2084 = vld [vmem:[#allocation8 + $0xb0] sm:$0xf]
          %v2085 = vld [vmem:[#allocation8 + $0xb4] sm:$0xf]
          %v2086 = vld [vmem:[#allocation8 + $0xb8] sm:$0xf]
          %v2087 = vld [vmem:[#allocation8 + $0xbc] sm:$0xf]
          %v2088 = vld [vmem:[#allocation8 + $0xc0] sm:$0xf]
          %v2089 = vld [vmem:[#allocation8 + $0xc4] sm:$0xf]
          %v2090 = vld [vmem:[#allocation8 + $0xc8] sm:$0xf]
          %v2091 = vld [vmem:[#allocation8 + $0xcc] sm:$0xf]
          %v2092 = vld [vmem:[#allocation8 + $0xd0] sm:$0xf]
          %v2093 = vld [vmem:[#allocation8 + $0xd4] sm:$0xf]
          %v2094 = vld [vmem:[#allocation8 + $0xd8] sm:$0xf]
          %v2095 = vld [vmem:[#allocation8 + $0xdc] sm:$0xf]
          %v2096 = vld [vmem:[#allocation8 + $0xe0] sm:$0xf]
          %v2097 = vld [vmem:[#allocation8 + $0xe4] sm:$0xf]
          %v2098 = vld [vmem:[#allocation8 + $0xe8] sm:$0xf]
          %v2099 = vld [vmem:[#allocation8 + $0xec] sm:$0xf]
          %v2100 = vld [vmem:[#allocation8 + $0xf0] sm:$0xf]
          %v2101 = vld [vmem:[#allocation8 + $0xf4] sm:$0xf]
          %v2102 = vld [vmem:[#allocation8 + $0xf8] sm:$0xf]
          %v2103 = vld [vmem:[#allocation8 + $0xfc] sm:$0xf]
          %v2104 = vld [vmem:[#allocation9 + $0x3] sm:$0x1]
          %v2105 = vlaneseq
          %v2106 = vshrl.u32 %v2105, 7
          %v2107 = vsub.s32 0, %v2106
          %v2108 = vrot.slane %v2104, %v2107
          %v2173 = vunpack.c.l.b16 %v2040
          %v2174 = vunpack.c.l.b16 %v2041
          %v2175 = vunpack.c.l.b16 %v2042
          %v2176 = vunpack.c.l.b16 %v2043
          %v2177 = vunpack.c.l.b16 %v2044
          %v2178 = vunpack.c.l.b16 %v2045
          %v2179 = vunpack.c.l.b16 %v2046
          %v2180 = vunpack.c.l.b16 %v2047
          %v2181 = vunpack.c.l.b16 %v2048
          %v2182 = vunpack.c.l.b16 %v2049
          %v2183 = vunpack.c.l.b16 %v2050
          %v2184 = vunpack.c.l.b16 %v2051
          %v2185 = vunpack.c.l.b16 %v2052
          %v2186 = vunpack.c.l.b16 %v2053
          %v2187 = vunpack.c.l.b16 %v2054
          %v2188 = vunpack.c.l.b16 %v2055
          %v2189 = vunpack.c.l.b16 %v2056
          %v2190 = vunpack.c.l.b16 %v2057
          %v2191 = vunpack.c.l.b16 %v2058
          %v2192 = vunpack.c.l.b16 %v2059
          %v2193 = vunpack.c.l.b16 %v2060
          %v2194 = vunpack.c.l.b16 %v2061
          %v2195 = vunpack.c.l.b16 %v2062
          %v2196 = vunpack.c.l.b16 %v2063
          %v2197 = vunpack.c.l.b16 %v2064
          %v2198 = vunpack.c.l.b16 %v2065
          %v2199 = vunpack.c.l.b16 %v2066
          %v2200 = vunpack.c.l.b16 %v2067
          %v2201 = vunpack.c.l.b16 %v2068
          %v2202 = vunpack.c.l.b16 %v2069
          %v2203 = vunpack.c.l.b16 %v2070
          %v2204 = vunpack.c.l.b16 %v2071
          %v2205 = vunpack.c.l.b16 %v2072
          %v2206 = vunpack.c.l.b16 %v2073
          %v2207 = vunpack.c.l.b16 %v2074
          %v2208 = vunpack.c.l.b16 %v2075
          %v2209 = vunpack.c.l.b16 %v2076
          %v2210 = vunpack.c.l.b16 %v2077
          %v2211 = vunpack.c.l.b16 %v2078
          %v2212 = vunpack.c.l.b16 %v2079
          %v2213 = vunpack.c.l.b16 %v2080
          %v2214 = vunpack.c.l.b16 %v2081
          %v2215 = vunpack.c.l.b16 %v2082
          %v2216 = vunpack.c.l.b16 %v2083
          %v2217 = vunpack.c.l.b16 %v2084
          %v2218 = vunpack.c.l.b16 %v2085
          %v2219 = vunpack.c.l.b16 %v2086
          %v2220 = vunpack.c.l.b16 %v2087
          %v2221 = vunpack.c.l.b16 %v2088
          %v2222 = vunpack.c.l.b16 %v2089
          %v2223 = vunpack.c.l.b16 %v2090
          %v2224 = vunpack.c.l.b16 %v2091
          %v2225 = vunpack.c.l.b16 %v2092
          %v2226 = vunpack.c.l.b16 %v2093
          %v2227 = vunpack.c.l.b16 %v2094
          %v2228 = vunpack.c.l.b16 %v2095
          %v2229 = vunpack.c.l.b16 %v2096
          %v2230 = vunpack.c.l.b16 %v2097
          %v2231 = vunpack.c.l.b16 %v2098
          %v2232 = vunpack.c.l.b16 %v2099
          %v2233 = vunpack.c.l.b16 %v2100
          %v2234 = vunpack.c.l.b16 %v2101
          %v2235 = vunpack.c.l.b16 %v2102
          %v2236 = vunpack.c.l.b16 %v2103
          %v2237 = vpack.c.b16 %v2174, %v2173
          %v2238 = vpack.c.b16 %v2176, %v2175
          %v2239 = vpack.c.b16 %v2178, %v2177
          %v2240 = vpack.c.b16 %v2180, %v2179
          %v2241 = vpack.c.b16 %v2182, %v2181
          %v2242 = vpack.c.b16 %v2184, %v2183
          %v2243 = vpack.c.b16 %v2186, %v2185
          %v2244 = vpack.c.b16 %v2188, %v2187
          %v2245 = vpack.c.b16 %v2190, %v2189
          %v2246 = vpack.c.b16 %v2192, %v2191
          %v2247 = vpack.c.b16 %v2194, %v2193
          %v2248 = vpack.c.b16 %v2196, %v2195
          %v2249 = vpack.c.b16 %v2198, %v2197
          %v2250 = vpack.c.b16 %v2200, %v2199
          %v2251 = vpack.c.b16 %v2202, %v2201
          %v2252 = vpack.c.b16 %v2204, %v2203
          %v2253 = vpack.c.b16 %v2206, %v2205
          %v2254 = vpack.c.b16 %v2208, %v2207
          %v2255 = vpack.c.b16 %v2210, %v2209
          %v2256 = vpack.c.b16 %v2212, %v2211
          %v2257 = vpack.c.b16 %v2214, %v2213
          %v2258 = vpack.c.b16 %v2216, %v2215
          %v2259 = vpack.c.b16 %v2218, %v2217
          %v2260 = vpack.c.b16 %v2220, %v2219
          %v2261 = vpack.c.b16 %v2222, %v2221
          %v2262 = vpack.c.b16 %v2224, %v2223
          %v2263 = vpack.c.b16 %v2226, %v2225
          %v2264 = vpack.c.b16 %v2228, %v2227
          %v2265 = vpack.c.b16 %v2230, %v2229
          %v2266 = vpack.c.b16 %v2232, %v2231
          %v2267 = vpack.c.b16 %v2234, %v2233
          %v2268 = vpack.c.b16 %v2236, %v2235
          %2301 = vmatprep.subr.bf16.mxu0 0
          %2302 = vmatpush1.bf16.msra.mxu0 %v2244
          %2303 = vmatprep.subr.bf16.mxu0 0
          %2304 = vmatpush1.bf16.msra.mxu0 %v2243
          %2305 = vmatprep.subr.bf16.mxu0 0
          %2306 = vmatpush1.bf16.msra.mxu0 %v2242
          %2307 = vmatprep.subr.bf16.mxu0 0
          %2308 = vmatpush1.bf16.msra.mxu0 %v2241
          %2309 = vmatprep.subr.bf16.mxu0 0
          %2310 = vmatpush1.bf16.msra.mxu0 %v2240
          %2311 = vmatprep.subr.bf16.mxu0 0
          %2312 = vmatpush1.bf16.msra.mxu0 %v2239
          %2313 = vmatprep.subr.bf16.mxu0 0
          %2314 = vmatpush1.bf16.msra.mxu0 %v2238
          %2315 = vmatprep.subr.bf16.mxu0 0
          %2316 = vmatpush1.bf16.msra.mxu0 %v2237
          %2317 = vmatprep.subr.bf16.mxu0 0
          %2318 = vmatpush2.bf16.msra.mxu0 %v2252
          %2319 = vmatprep.subr.bf16.mxu0 0
          %2320 = vmatpush2.bf16.msra.mxu0 %v2251
          %2321 = vmatprep.subr.bf16.mxu0 0
          %2322 = vmatpush2.bf16.msra.mxu0 %v2250
          %2323 = vmatprep.subr.bf16.mxu0 0
          %2324 = vmatpush2.bf16.msra.mxu0 %v2249
          %2325 = vmatprep.subr.bf16.mxu0 0
          %2326 = vmatpush2.bf16.msra.mxu0 %v2248
          %2327 = vmatprep.subr.bf16.mxu0 0
          %2328 = vmatpush2.bf16.msra.mxu0 %v2247
          %2329 = vmatprep.subr.bf16.mxu0 0
          %2330 = vmatpush2.bf16.msra.mxu0 %v2246
          %2331 = vmatprep.subr.bf16.mxu0 0
          %2332 = vmatpush2.bf16.msra.mxu0 %v2245
          %2333 = vmatprep.mubr.bf16.mxu0 %v2037
          %2334 = vmatmul.mubr.bf16.gmra.mxu0 %v2036
          %v2335 = vpop.f32.mrf.mxu0
          %v2336 = vadd.f32 %v2108, %v2335
          %v2337 = vpop.f32.mrf.mxu0
          %v2338 = vpop.f32.mrf.mxu0
          %v2339 = vadd.f32 %v2108, %v2338
          %v2340 = vpop.f32.mrf.mxu0
          %2341 = vdwg.mxu0
          %2342 = vmatprep.subr.bf16.mxu0 0
          %2343 = vmatpush1.bf16.msra.mxu0 %v2260
          %2344 = vmatprep.subr.bf16.mxu0 0
          %2345 = vmatpush1.bf16.msra.mxu0 %v2259
          %2346 = vmatprep.subr.bf16.mxu0 0
          %2347 = vmatpush1.bf16.msra.mxu0 %v2258
          %2348 = vmatprep.subr.bf16.mxu0 0
          %2349 = vmatpush1.bf16.msra.mxu0 %v2257
          %2350 = vmatprep.subr.bf16.mxu0 0
          %2351 = vmatpush1.bf16.msra.mxu0 %v2256
          %2352 = vmatprep.subr.bf16.mxu0 0
          %2353 = vmatpush1.bf16.msra.mxu0 %v2255
          %2354 = vmatprep.subr.bf16.mxu0 0
          %2355 = vmatpush1.bf16.msra.mxu0 %v2254
          %2356 = vmatprep.subr.bf16.mxu0 0
          %2357 = vmatpush1.bf16.msra.mxu0 %v2253
          %2358 = vmatprep.subr.bf16.mxu0 0
          %2359 = vmatpush2.bf16.msra.mxu0 %v2268
          %2360 = vmatprep.subr.bf16.mxu0 0
          %2361 = vmatpush2.bf16.msra.mxu0 %v2267
          %2362 = vmatprep.subr.bf16.mxu0 0
          %2363 = vmatpush2.bf16.msra.mxu0 %v2266
          %2364 = vmatprep.subr.bf16.mxu0 0
          %2365 = vmatpush2.bf16.msra.mxu0 %v2265
          %2366 = vmatprep.subr.bf16.mxu0 0
          %2367 = vmatpush2.bf16.msra.mxu0 %v2264
          %2368 = vmatprep.subr.bf16.mxu0 0
          %2369 = vmatpush2.bf16.msra.mxu0 %v2263
          %2370 = vmatprep.subr.bf16.mxu0 0
          %2371 = vmatpush2.bf16.msra.mxu0 %v2262
          %2372 = vmatprep.subr.bf16.mxu0 0
          %2373 = vmatpush2.bf16.msra.mxu0 %v2261
          %2374 = vmatprep.mubr.bf16.mxu0 %v2039
          %2375 = vmatmul.mubr.bf16.gmra.mxu0 %v2038
          %v2376 = vpop.f32.mrf.mxu0
          %v2377 = vadd.f32 %v2336, %v2376
          %v2378 = vpop.f32.mrf.mxu0
          %v2379 = vpop.f32.mrf.mxu0
          %v2380 = vadd.f32 %v2339, %v2379
          %v2381 = vpop.f32.mrf.mxu0
          %2382 = vdwg.mxu0
          %v2383 = vlaneseq
          %v2384 = vand.u32 %v2383, 127
          %2385 = vset.pattern.permute.xlu0 16
          %2386 = vperm.xlu0 %2385, %v1461
          %v2387 = vpop.permute.xlu0 %2386
          %2388 = vset.pattern.permute.xlu0 16
          %2389 = vperm.xlu0 %2388, %v1462
          %v2390 = vpop.permute.xlu0 %2389
          %vm2391 = vcmp.eq.s32.totalorder %v2384, %v2387
          %vm2392 = vcmp.eq.s32.totalorder %v2384, %v2390
          %v2393 = vsel %vm2391, 1, 0
          %v2394 = vsel %vm2392, 1, 0
          %v2395 = vcvt.s32.f32 %v2393
          %v2396 = vcvt.s32.f32 %v2394
          %2399 = vrot.lane.b32.xlu0 %v2395, 64
          %v2400 = vpop.permute.xlu0 %2399
          %2401 = vrot.lane.b32.xlu0 %v2396, 64
          %v2402 = vpop.permute.xlu0 %2401
          %v2405 = vsel %vm1745, %v1783, %v1829
          %v2406 = vsel %vm1745, %v1784, %v1830
          %vm2407 = vcmask 523264
          %v2408 = vsel %vm2407, %v2405, %v2400
          %v2409 = vsel %vm2407, %v2406, %v2402
          %vm2410 = vcmask 785408
          %v2411 = vsel %vm2410, %v2408, 0.0
          %v2412 = vsel %vm2410, %v2409, 0.0
          %2413 = vset.pattern.permute.xlu0 17
          %2414 = vperm.xlu0 %2413, %v1459
          %v2415 = vpop.permute.xlu0 %2414
          %2417 = vset.pattern.permute.xlu0 17
          %2418 = vperm.xlu0 %2417, %v1460
          %v2419 = vpop.permute.xlu0 %2418
          %v2421 = vmul.f32 %v2411, %v2415
          %v2422 = vmul.f32 %v2412, %v2419
          %2425 = vrot.lane.b32.xlu0 %v1873, 64
          %v2426 = vpop.permute.xlu0 %2425
          %2427 = vrot.lane.b32.xlu0 %v1874, 64
          %v2428 = vpop.permute.xlu0 %2427
          %v2431 = vsel %vm1745, %v2426, %v1829
          %v2432 = vsel %vm1745, %v2428, %v1830
          %v2433 = vsel %vm2407, %v2431, %v2400
          %v2434 = vsel %vm2407, %v2432, %v2402
          %v2435 = vsel %vm2410, %v2433, 0.0
          %v2436 = vsel %vm2410, %v2434, 0.0
          %v2437 = vmul.f32 %v2435, %v2415
          %v2438 = vmul.f32 %v2436, %v2419
          %v2439 = vld [vmem:[#allocation3] sm:$0xff]
          %v2440 = vld [vmem:[#allocation3 + $0x8] sm:$0xff]
          %v2441 = vmul.f32 %v2439, %v2415
          %v2442 = vmul.f32 %v2440, %v2419
          %2443 = vst [vmem:[%s8] sm:$0xff] %v2441
          %2444 = vst [vmem:[%s8 + $0x10] sm:$0xff] %v2442
          %2445 = vst [vmem:[%s8 + $0x8] sm:$0xff] %v2421
          %2446 = vst [vmem:[%s8 + $0x18] sm:$0xff] %v2422
          %v2447 = vmul.f32 %v2377, %v2415
          %v2448 = vmul.f32 %v2380, %v2419
          %2449 = vst [vmem:[%s9] sm:$0xff] %v2447
          %2450 = vst [vmem:[%s9 + $0x10] sm:$0xff] %v2448
          %2451 = vst [vmem:[%s9 + $0x8] sm:$0xff] %v2437
          %2452 = vst [vmem:[%s9 + $0x18] sm:$0xff] %v2438
        $region107: #{caption_features.1} parent=70 // pred_fallthru
          _
        // Predicated region
        $region108: #{caption_features.1} parent=70 // pred_check
          %p2453 = pneg %p218
        $region109: #{caption_features.1} parent=70 // pred_check_branch
          %2455 = sbr.rel (%p2453) target = $region111
        $region110: #{caption_features.1} parent=70 // pred_region
          _
        $region111: #{caption_features.1} parent=70 // pred_fallthru
          _
        // Predicated region
        $region112: #{caption_features.1} parent=70 // pred_check
          %p2456 = pneg %p239
        $region113: #{caption_features.1} parent=70 // pred_check_branch
          %2458 = sbr.rel (%p2456) target = $region115
        $region114: #{caption_features.1} parent=70 // pred_region
          _
        $region115: #{caption_features.1} parent=70 // pred_fallthru
          _
        // Predicated region
        $region116: #{caption_features.1} parent=70 // pred_check
          %p2459 = pneg %p218
        $region117: #{caption_features.1} parent=70 // pred_check_branch
          %2461 = sbr.rel (%p2459) target = $region119
        $region118: #{caption_features.1} parent=70 // pred_region
          _
        $region119: #{caption_features.1} parent=70 // pred_fallthru
          _
        // Predicated region
        $region120: #{caption_features.1} parent=70 // pred_check
          %p2462 = pneg %p239
        $region121: #{caption_features.1} parent=70 // pred_check_branch
          %2464 = sbr.rel (%p2462) target = $region123
        $region122: #{caption_features.1} parent=70 // pred_region
          _
        $region123: #{caption_features.1} parent=70 // pred_fallthru
          _
      $region71: #{caption_features.1} parent=5 // pred_fallthru
        _
      %p2465 = scmp.le.s32.totalorder 2, %s22
      // Predicated region
      $region124: #{caption_features.1} parent=5 // pred_check
        %p2466 = pneg %p2465
      $region125: #{caption_features.1} parent=5 // pred_check_branch
        %2468 = sbr.rel (%p2466) target = $region127
      $region126: #{caption_features.1} parent=5 // pred_region
        %s2469 = ssub.s32 %s22, 2
      $region127: #{caption_features.1} parent=5 // pred_fallthru
        _
    $region6: #{caption_features.1} parent=1 // loop_footer
      %s26 = sadd.s32 1, %s22
    $region7: #{caption_features.1} parent=1 // loop_footer_branch
      %21 = sbr.rel target = $region3
    $region8: #{caption_features.1} parent=1 // loop_exit
      _
    %2470 = vsyncpa [#allocation4], 1
    %s2471 = scalar_lea.sflag [#allocation4], 1
    %2472 = vsyncpa %s2471, 1
    %2473 = vsyncpa [#allocation7], 1
    %s2474 = scalar_lea.sflag [#allocation7], 1
    %2475 = vsyncpa %s2474, 1
    %2476 = vsyncpa [#allocation10], 1
    %2477 = vsyncpa [#allocation13], 1

</llo_original>
